<compile_context>
chip_gen: v7x
topology: tpu7x:2x2x1
jax: 0.10.0
libtpu: 0.0.40
codegen_flags: <defaults>
</compile_context>

<pallas_src>
import jax
import jax.numpy as jnp
import numpy as np
from jax.experimental import pallas as pl
from jax.experimental.pallas import tpu as pltpu

SQRT_HALF = 0.7071067811865476

# Fixed problem geometry (specialized to the spec input (1, 3, 32, 32)).
H = W = 32
CIN = 3
C1, C2, C3 = 4, 4, 2          # conv1/conv2/conv3 output channels
W1OUT = W - 2                 # 30  (conv1 valid output width/height)
W2OUT = (W1OUT - 9) // 3 + 1  # 8   (conv2 stride-3 output width/height)
ZBLK = 128                    # lane-padded width of one packed conv1 row
YBLK = 128                    # lane-padded width of conv2/conv3 outputs


# ----------------------------------------------------------------------------
# In-kernel math helpers
# ----------------------------------------------------------------------------
def _erf(x):
    # TODO(synk): Mosaic has no erf primitive -> Abramowitz & Stegun 7.1.26
    # polynomial (max abs err ~1.5e-7); the denominator uses the cheap EUP
    # approximate-reciprocal path.
    a1, a2, a3, a4, a5 = (0.254829592, -0.284496736, 1.421413741,
                          -1.453152027, 1.061405429)
    p = 0.3275911
    ax = jnp.abs(x)
    t = pl.reciprocal(1.0 + p * ax, approx=True)
    poly = t * (a1 + t * (a2 + t * (a3 + t * (a4 + t * a5))))
    y = 1.0 - poly * jnp.exp(-ax * ax)
    return jnp.where(x >= 0.0, y, -y)


def _gelu_exact(x):
    # mirrors: v2 = x*0.5 ; v3 = x*0.7071... ; out = v2 * (erf(v3) + 1)
    return (x * 0.5) * (_erf(x * SQRT_HALF) + 1.0)


# ----------------------------------------------------------------------------
# The single fused Pallas kernel (3 matmuls total)
# ----------------------------------------------------------------------------
def _fused_kernel(xz_ref, m1_ref, b1_ref, m2_ref, b2_ref, m3_ref, b3_ref,
                  o_ref):
    """Whole model on 2-D slabs, everything resident in VMEM.

    xz_ref : (12, 288)  f32   input, 3 image rows packed per slab row
    m1_ref : (576, 384) bf16  conv1 banded weights, both row taps stacked (K)
    b1_ref : (1, 384)   f32
    m2_ref : (1152,128) bf16  conv2 banded weights (stride-3 folded), 3 taps
    b2_ref : (1, 128)   f32
    m3_ref : (384, 128) bf16  conv3 banded weights (width pad folded), 3 taps
    b3_ref : (1, 128)   f32
    o_ref  : (8, 128)   f32   output slab (first 16 lanes valid)
    """
    xz = xz_ref[...]                                               # (12, 288)

    # ---- conv1 (3x3 valid): both slab-row taps fused into ONE matmul -------
    lhs1 = jnp.concatenate([xz[0:10, :], xz[1:11, :]], axis=1)     # (10, 576)
    z = jnp.dot(lhs1.astype(jnp.bfloat16), m1_ref[...],
                preferred_element_type=jnp.float32) + b1_ref[...]
    z = _gelu_exact(z)                                             # (10, 384)

    # ---- conv2 (9x9, stride 3): row stride pre-packed into lanes by conv1's
    # output layout; the 3 slab-row taps are fused into ONE matmul ----------
    lhs2 = jnp.concatenate([z[0:8, :], z[1:9, :], z[2:10, :]], axis=1)
    y2 = jnp.dot(lhs2.astype(jnp.bfloat16), m2_ref[...],           # (8, 1152)
                 preferred_element_type=jnp.float32) + b2_ref[...]
    y2 = _gelu_exact(y2) + 1.0                                     # (8, 128)

    # ---- conv3 (3x3, padding 1): width pad folded into m3; row pad done by
    # static sublane shifts (zero row + slice) instead of shift matmuls; all
    # 3 row taps fused into ONE matmul ---------------------------------------
    zrow = jnp.zeros((1, YBLK), jnp.float32)
    y_dn = jnp.concatenate([zrow, y2[:7, :]], axis=0)              # row ho-1
    y_up = jnp.concatenate([y2[1:, :], zrow], axis=0)              # row ho+1
    lhs3 = jnp.concatenate([y_dn, y2, y_up], axis=1)               # (8, 384)
    out = jnp.dot(lhs3.astype(jnp.bfloat16), m3_ref[...],
                  preferred_element_type=jnp.float32) + b3_ref[...]
    o_ref[...] = out.astype(o_ref.dtype)                           # (8, 128)


def _fused_call(xz, c):
    vmem = lambda: pl.BlockSpec(memory_space=pltpu.MemorySpace.VMEM)
    return pl.pallas_call(
        _fused_kernel,
        out_shape=jax.ShapeDtypeStruct((W2OUT, YBLK), jnp.float32),
        in_specs=[vmem()] * 7,
        out_specs=vmem(),
    )(xz, c["m1"], c["b1"], c["m2"], c["b2"], c["m3"], c["b3"])


# ----------------------------------------------------------------------------
# Parameter setup
# ----------------------------------------------------------------------------
def init_params(key):
    k1, k2, k3, k4, k5, k6 = jax.random.split(key, 6)

    def u(k, shape, fan_in):
        bound = 1.0 / np.sqrt(fan_in)
        return jax.random.uniform(k, shape, jnp.float32, -bound, bound)

    # weights stored HWIO
    w1 = u(k1, (3, 3, 3, C1), 3 * 3 * 3)    # conv1 (widened to 4 out channels)
    b1 = u(k2, (C1,), 3 * 3 * 3)
    w2 = u(k3, (9, 9, C1, C2), C1 * 9 * 9)  # conv2
    b2 = u(k4, (C2,), C1 * 9 * 9)
    w3 = u(k5, (3, 3, C2, C3), C2 * 3 * 3)  # conv3
    b3 = u(k6, (C3,), C2 * 3 * 3)
    return dict(w1=w1, b1=b1, w2=w2, b2=b2, w3=w3, b3=b3)


def build_constants(params):
    """Host-side, ONE-TIME construction of the banded matrices / bias rows."""
    w1 = np.asarray(params["w1"], np.float32)
    b1 = np.asarray(params["b1"], np.float32)
    w2 = np.asarray(params["w2"], np.float32)
    b2 = np.asarray(params["b2"], np.float32)
    w3 = np.asarray(params["w3"], np.float32)
    b3 = np.asarray(params["b3"], np.float32)

    # width-Toeplitz for conv1 row taps: (3, W*CIN, W1OUT*C1) = (3, 96, 120)
    t1 = np.zeros((3, W * CIN, W1OUT * C1), np.float32)
    for kh in range(3):
        for j in range(W1OUT):
            for kw in range(3):
                t1[kh, (j + kw) * CIN:(j + kw + 1) * CIN,
                   j * C1:(j + 1) * C1] = w1[kh, kw]

    # m1: (2, 3*W*CIN, 3*ZBLK).  Input slab row i holds image rows 3i..3i+2;
    # output slab row j holds conv1 output rows 3j..3j+2 packed along lanes
    # (lane-padded to 128 each), so conv2's row stride 3 vanishes.
    m1 = np.zeros((2, 3 * W * CIN, 3 * ZBLK), np.float32)
    for t in range(3):            # which conv1-output row inside slab row j
        for kh in range(3):       # conv1 row tap
            p, s = divmod(t + kh, 3)   # image row 3j+t+kh = 3(j+p)+s
            m1[p, s * W * CIN:(s + 1) * W * CIN,
               t * ZBLK:t * ZBLK + W1OUT * C1] = t1[kh]
    b1row = np.zeros((1, 3 * ZBLK), np.float32)
    for t in range(3):
        b1row[0, t * ZBLK:t * ZBLK + W1OUT * C1] = np.tile(b1, W1OUT)

    # m2: (3, 3*ZBLK, YBLK).  9 conv2 row taps split as kh2 = 3q + r; q is the
    # slab-row tap, r selects the packed block; width stride 3 is in the cols.
    m2 = np.zeros((3, 3 * ZBLK, YBLK), np.float32)
    for q in range(3):
        for r in range(3):
            kh2 = 3 * q + r
            for j in range(W2OUT):
                for kw in range(9):
                    win = 3 * j + kw
                    m2[q, r * ZBLK + win * C1:r * ZBLK + (win + 1) * C1,
                       j * C2:(j + 1) * C2] = w2[kh2, kw]
    b2row = np.zeros((1, YBLK), np.float32)
    b2row[0, :W2OUT * C2] = np.tile(b2, W2OUT)

    # m3: (3, YBLK, YBLK), "same" width padding folded in.  Rows >= 32 stay
    # zero so the lane padding of y2 (which equals 1 after GELU+1) is ignored.
    m3 = np.zeros((3, YBLK, YBLK), np.float32)
    for kh in range(3):
        for j in range(W2OUT):
            for kw in range(3):
                win = j + kw - 1
                if 0 <= win < W2OUT:
                    m3[kh, win * C2:(win + 1) * C2,
                       j * C3:(j + 1) * C3] = w3[kh, kw]
    b3row = np.zeros((1, YBLK), np.float32)
    b3row[0, :W2OUT * C3] = np.tile(b3, W2OUT)

    # Tap-fused ("long-K") layouts so each conv stage is ONE matmul; weights
    # stored bf16 (f32 accumulation in-kernel) to halve per-call constant DMA.
    return dict(
        m1=jnp.asarray(m1.reshape(2 * 3 * W * CIN, 3 * ZBLK), jnp.bfloat16),
        b1=jnp.asarray(b1row, jnp.float32),
        m2=jnp.asarray(m2.reshape(3 * 3 * ZBLK, YBLK), jnp.bfloat16),
        b2=jnp.asarray(b2row, jnp.float32),
        m3=jnp.asarray(m3.reshape(3 * YBLK, YBLK), jnp.bfloat16),
        b3=jnp.asarray(b3row, jnp.float32),
    )


# ----------------------------------------------------------------------------
# Forward pass (thin wrapper; all conv math lives in the single Pallas kernel)
# ----------------------------------------------------------------------------
def model_forward(x_nchw, consts):
    assert x_nchw.shape == (1, CIN, H, W), "constants specialized to (1,3,32,32)"
    # NCHW -> (H, W*C) channel-minor slab, pad H to a multiple of 3, then pack
    # 3 image rows per slab row.  (The transpose is a tiny XLA op inside the
    # same jit; folding it into m1 cannot remove it because the H axis must
    # become the sublane axis.)
    x_slab = jnp.transpose(x_nchw[0], (1, 2, 0)).reshape(H, W * CIN)   # (32,96)
    x_pad = jnp.pad(x_slab, ((0, 4), (0, 0)))                          # (36,96)
    xz = x_pad.reshape(12, 3 * W * CIN)                                # (12,288)

    out = _fused_call(xz, consts)                                      # (8,128)

    # back to NCHW: (1, 2, 8, 8)
    y = out[:, :W2OUT * C3].reshape(W2OUT, W2OUT, C3).transpose(2, 0, 1)
    return y[None]


# ----------------------------------------------------------------------------
# Pure-JAX reference (for validation only)
# ----------------------------------------------------------------------------
def reference_forward(x_nchw, params):
    from jax.scipy.special import erf
    dn = ("NCHW", "OIHW", "NCHW")

    def conv(x, w_hwio, b, stride, pad):
        w_oihw = jnp.transpose(w_hwio, (3, 2, 0, 1))
        y = jax.lax.conv_general_dilated(x, w_oihw, (stride, stride), pad,
                                         dimension_numbers=dn)
        return y + b[None, :, None, None]

    v1 = conv(x_nchw, params["w1"], params["b1"], 1, "VALID")
    v6 = (v1 * 0.5) * (erf(v1 * SQRT_HALF) + 1.0)
    v6 = conv(v6, params["w2"], params["b2"], 3, "VALID")
    v11 = (v6 * 0.5) * (erf(v6 * SQRT_HALF) + 1.0)
    v12 = v11 + 1.0
    return conv(v12, params["w3"], params["b3"], 1, ((1, 1), (1, 1)))


if __name__ == "__main__":
    key = jax.random.PRNGKey(0)
    pkey, xkey = jax.random.split(key)
    params = init_params(pkey)
    consts = build_constants(params)          # hoisted out of the forward path
    x = jax.random.normal(xkey, (1, CIN, H, W), jnp.float32)

    fwd = jax.jit(model_forward)
    out = jax.block_until_ready(fwd(x, consts))
    assert out.shape == (1, 2, 8, 8), out.shape

    # Tolerance covers bf16 MXU operands + EUP approximate reciprocal.
    ref = reference_forward(x, params)
    np.testing.assert_allclose(np.asarray(out), np.asarray(ref),
                               rtol=3e-2, atol=3e-2)
    print("KERNEL_OK")
</pallas_src>

<mosaic_0001>
module attributes {stable_mosaic.version = 11 : i64} {
  func.func @_fused_kernel(%arg0: memref<12x288xf32, #tpu.memory_space<vmem>>, %arg1: memref<576x384xbf16, #tpu.memory_space<vmem>>, %arg2: memref<1x384xf32, #tpu.memory_space<vmem>>, %arg3: memref<1152x128xbf16, #tpu.memory_space<vmem>>, %arg4: memref<1x128xf32, #tpu.memory_space<vmem>>, %arg5: memref<384x128xbf16, #tpu.memory_space<vmem>>, %arg6: memref<1x128xf32, #tpu.memory_space<vmem>>, %arg7: memref<8x128xf32, #tpu.memory_space<vmem>>) attributes {dimension_semantics = [], scalar_prefetch = 0 : i64, scratch_operands = 0 : i64, tpu.core_type = #tpu.core_type<tc>} {
    %c0 = arith.constant 0 : index
    %c0_0 = arith.constant 0 : index
    %0 = vector.load %arg0[%c0, %c0_0] : memref<12x288xf32, #tpu.memory_space<vmem>>, vector<12x288xf32>
    %1 = vector.extract_strided_slice %0 {offsets = [0, 0], sizes = [10, 288], strides = [1, 1]} : vector<12x288xf32> to vector<10x288xf32>
    %2 = vector.extract_strided_slice %0 {offsets = [1, 0], sizes = [10, 288], strides = [1, 1]} : vector<12x288xf32> to vector<10x288xf32>
    %3 = tpu.concatenate %1, %2 in 1 : vector<10x288xf32>, vector<10x288xf32> -> vector<10x576xf32>
    %4 = arith.truncf %3 : vector<10x576xf32> to vector<10x576xbf16>
    %c0_1 = arith.constant 0 : index
    %c0_2 = arith.constant 0 : index
    %5 = vector.load %arg1[%c0_1, %c0_2] : memref<576x384xbf16, #tpu.memory_space<vmem>>, vector<576x384xbf16>
    %cst = arith.constant dense<0.000000e+00> : vector<10x384xf32>
    %6 = tpu.matmul %4, %5, %cst {dimension_numbers = #tpu.dot_dimension_numbers<[1], [0], [0], [1], [0, 0, 1, 1], [], []>} : vector<10x576xbf16>, vector<576x384xbf16>, vector<10x384xf32> -> vector<10x384xf32>
    %c0_3 = arith.constant 0 : index
    %c0_4 = arith.constant 0 : index
    %7 = vector.load %arg2[%c0_3, %c0_4] : memref<1x384xf32, #tpu.memory_space<vmem>>, vector<1x384xf32>
    %8 = vector.broadcast %7 : vector<1x384xf32> to vector<10x384xf32>
    %9 = arith.addf %6, %8 : vector<10x384xf32>
    %cst_5 = arith.constant 5.000000e-01 : f32
    %10 = vector.broadcast %cst_5 : f32 to vector<10x384xf32>
    %11 = arith.mulf %9, %10 : vector<10x384xf32>
    %cst_6 = arith.constant 0.707106769 : f32
    %12 = vector.broadcast %cst_6 : f32 to vector<10x384xf32>
    %13 = arith.mulf %9, %12 : vector<10x384xf32>
    %14 = math.absf %13 : vector<10x384xf32>
    %cst_7 = arith.constant 0.327591091 : f32
    %15 = vector.broadcast %cst_7 : f32 to vector<10x384xf32>
    %16 = arith.mulf %15, %14 : vector<10x384xf32>
    %cst_8 = arith.constant 1.000000e+00 : f32
    %17 = vector.broadcast %cst_8 : f32 to vector<10x384xf32>
    %18 = arith.addf %17, %16 : vector<10x384xf32>
    %19 = tpu.reciprocal %18 {approx = true} : vector<10x384xf32> -> vector<10x384xf32>
    %cst_9 = arith.constant 1.06140542 : f32
    %20 = vector.broadcast %cst_9 : f32 to vector<10x384xf32>
    %21 = arith.mulf %19, %20 : vector<10x384xf32>
    %cst_10 = arith.constant -1.45315206 : f32
    %22 = vector.broadcast %cst_10 : f32 to vector<10x384xf32>
    %23 = arith.addf %22, %21 : vector<10x384xf32>
    %24 = arith.mulf %19, %23 : vector<10x384xf32>
    %cst_11 = arith.constant 1.42141378 : f32
    %25 = vector.broadcast %cst_11 : f32 to vector<10x384xf32>
    %26 = arith.addf %25, %24 : vector<10x384xf32>
    %27 = arith.mulf %19, %26 : vector<10x384xf32>
    %cst_12 = arith.constant -0.284496725 : f32
    %28 = vector.broadcast %cst_12 : f32 to vector<10x384xf32>
    %29 = arith.addf %28, %27 : vector<10x384xf32>
    %30 = arith.mulf %19, %29 : vector<10x384xf32>
    %cst_13 = arith.constant 0.254829586 : f32
    %31 = vector.broadcast %cst_13 : f32 to vector<10x384xf32>
    %32 = arith.addf %31, %30 : vector<10x384xf32>
    %33 = arith.mulf %19, %32 : vector<10x384xf32>
    %cst_14 = arith.constant 0.000000e+00 : f32
    %34 = vector.broadcast %cst_14 : f32 to vector<10x384xf32>
    %35 = arith.subf %34, %14 : vector<10x384xf32>
    %36 = arith.mulf %35, %14 : vector<10x384xf32>
    %37 = math.exp %36 : vector<10x384xf32>
    %38 = arith.mulf %33, %37 : vector<10x384xf32>
    %cst_15 = arith.constant 1.000000e+00 : f32
    %39 = vector.broadcast %cst_15 : f32 to vector<10x384xf32>
    %40 = arith.subf %39, %38 : vector<10x384xf32>
    %cst_16 = arith.constant 0.000000e+00 : f32
    %41 = vector.broadcast %cst_16 : f32 to vector<10x384xf32>
    %42 = arith.cmpf oge, %13, %41 : vector<10x384xf32>
    %cst_17 = arith.constant 0.000000e+00 : f32
    %43 = vector.broadcast %cst_17 : f32 to vector<10x384xf32>
    %44 = arith.subf %43, %40 : vector<10x384xf32>
    %45 = arith.select %42, %40, %44 : vector<10x384xi1>, vector<10x384xf32>
    %cst_18 = arith.constant 1.000000e+00 : f32
    %46 = vector.broadcast %cst_18 : f32 to vector<10x384xf32>
    %47 = arith.addf %45, %46 : vector<10x384xf32>
    %48 = arith.mulf %11, %47 : vector<10x384xf32>
    %49 = vector.extract_strided_slice %48 {offsets = [0, 0], sizes = [8, 384], strides = [1, 1]} : vector<10x384xf32> to vector<8x384xf32>
    %50 = vector.extract_strided_slice %48 {offsets = [1, 0], sizes = [8, 384], strides = [1, 1]} : vector<10x384xf32> to vector<8x384xf32>
    %51 = vector.extract_strided_slice %48 {offsets = [2, 0], sizes = [8, 384], strides = [1, 1]} : vector<10x384xf32> to vector<8x384xf32>
    %52 = tpu.concatenate %49, %50, %51 in 1 : vector<8x384xf32>, vector<8x384xf32>, vector<8x384xf32> -> vector<8x1152xf32>
    %53 = arith.truncf %52 : vector<8x1152xf32> to vector<8x1152xbf16>
    %c0_19 = arith.constant 0 : index
    %c0_20 = arith.constant 0 : index
    %54 = vector.load %arg3[%c0_19, %c0_20] : memref<1152x128xbf16, #tpu.memory_space<vmem>>, vector<1152x128xbf16>
    %cst_21 = arith.constant dense<0.000000e+00> : vector<8x128xf32>
    %55 = tpu.matmul %53, %54, %cst_21 {dimension_numbers = #tpu.dot_dimension_numbers<[1], [0], [0], [1], [0, 0, 1, 1], [], []>} : vector<8x1152xbf16>, vector<1152x128xbf16>, vector<8x128xf32> -> vector<8x128xf32>
    %c0_22 = arith.constant 0 : index
    %c0_23 = arith.constant 0 : index
    %56 = vector.load %arg4[%c0_22, %c0_23] : memref<1x128xf32, #tpu.memory_space<vmem>>, vector<1x128xf32>
    %57 = vector.broadcast %56 : vector<1x128xf32> to vector<8x128xf32>
    %58 = arith.addf %55, %57 : vector<8x128xf32>
    %cst_24 = arith.constant 5.000000e-01 : f32
    %59 = vector.broadcast %cst_24 : f32 to vector<8x128xf32>
    %60 = arith.mulf %58, %59 : vector<8x128xf32>
    %cst_25 = arith.constant 0.707106769 : f32
    %61 = vector.broadcast %cst_25 : f32 to vector<8x128xf32>
    %62 = arith.mulf %58, %61 : vector<8x128xf32>
    %63 = math.absf %62 : vector<8x128xf32>
    %cst_26 = arith.constant 0.327591091 : f32
    %64 = vector.broadcast %cst_26 : f32 to vector<8x128xf32>
    %65 = arith.mulf %64, %63 : vector<8x128xf32>
    %cst_27 = arith.constant 1.000000e+00 : f32
    %66 = vector.broadcast %cst_27 : f32 to vector<8x128xf32>
    %67 = arith.addf %66, %65 : vector<8x128xf32>
    %68 = tpu.reciprocal %67 {approx = true} : vector<8x128xf32> -> vector<8x128xf32>
    %cst_28 = arith.constant 1.06140542 : f32
    %69 = vector.broadcast %cst_28 : f32 to vector<8x128xf32>
    %70 = arith.mulf %68, %69 : vector<8x128xf32>
    %cst_29 = arith.constant -1.45315206 : f32
    %71 = vector.broadcast %cst_29 : f32 to vector<8x128xf32>
    %72 = arith.addf %71, %70 : vector<8x128xf32>
    %73 = arith.mulf %68, %72 : vector<8x128xf32>
    %cst_30 = arith.constant 1.42141378 : f32
    %74 = vector.broadcast %cst_30 : f32 to vector<8x128xf32>
    %75 = arith.addf %74, %73 : vector<8x128xf32>
    %76 = arith.mulf %68, %75 : vector<8x128xf32>
    %cst_31 = arith.constant -0.284496725 : f32
    %77 = vector.broadcast %cst_31 : f32 to vector<8x128xf32>
    %78 = arith.addf %77, %76 : vector<8x128xf32>
    %79 = arith.mulf %68, %78 : vector<8x128xf32>
    %cst_32 = arith.constant 0.254829586 : f32
    %80 = vector.broadcast %cst_32 : f32 to vector<8x128xf32>
    %81 = arith.addf %80, %79 : vector<8x128xf32>
    %82 = arith.mulf %68, %81 : vector<8x128xf32>
    %cst_33 = arith.constant 0.000000e+00 : f32
    %83 = vector.broadcast %cst_33 : f32 to vector<8x128xf32>
    %84 = arith.subf %83, %63 : vector<8x128xf32>
    %85 = arith.mulf %84, %63 : vector<8x128xf32>
    %86 = math.exp %85 : vector<8x128xf32>
    %87 = arith.mulf %82, %86 : vector<8x128xf32>
    %cst_34 = arith.constant 1.000000e+00 : f32
    %88 = vector.broadcast %cst_34 : f32 to vector<8x128xf32>
    %89 = arith.subf %88, %87 : vector<8x128xf32>
    %cst_35 = arith.constant 0.000000e+00 : f32
    %90 = vector.broadcast %cst_35 : f32 to vector<8x128xf32>
    %91 = arith.cmpf oge, %62, %90 : vector<8x128xf32>
    %cst_36 = arith.constant 0.000000e+00 : f32
    %92 = vector.broadcast %cst_36 : f32 to vector<8x128xf32>
    %93 = arith.subf %92, %89 : vector<8x128xf32>
    %94 = arith.select %91, %89, %93 : vector<8x128xi1>, vector<8x128xf32>
    %cst_37 = arith.constant 1.000000e+00 : f32
    %95 = vector.broadcast %cst_37 : f32 to vector<8x128xf32>
    %96 = arith.addf %94, %95 : vector<8x128xf32>
    %97 = arith.mulf %60, %96 : vector<8x128xf32>
    %cst_38 = arith.constant 1.000000e+00 : f32
    %98 = vector.broadcast %cst_38 : f32 to vector<8x128xf32>
    %99 = arith.addf %97, %98 : vector<8x128xf32>
    %cst_39 = arith.constant 0.000000e+00 : f32
    %100 = vector.broadcast %cst_39 : f32 to vector<1x128xf32>
    %101 = vector.extract_strided_slice %99 {offsets = [0, 0], sizes = [7, 128], strides = [1, 1]} : vector<8x128xf32> to vector<7x128xf32>
    %102 = tpu.concatenate %100, %101 in 0 : vector<1x128xf32>, vector<7x128xf32> -> vector<8x128xf32>
    %103 = vector.extract_strided_slice %99 {offsets = [1, 0], sizes = [7, 128], strides = [1, 1]} : vector<8x128xf32> to vector<7x128xf32>
    %104 = tpu.concatenate %103, %100 in 0 : vector<7x128xf32>, vector<1x128xf32> -> vector<8x128xf32>
    %105 = tpu.concatenate %102, %99, %104 in 1 : vector<8x128xf32>, vector<8x128xf32>, vector<8x128xf32> -> vector<8x384xf32>
    %106 = arith.truncf %105 : vector<8x384xf32> to vector<8x384xbf16>
    %c0_40 = arith.constant 0 : index
    %c0_41 = arith.constant 0 : index
    %107 = vector.load %arg5[%c0_40, %c0_41] : memref<384x128xbf16, #tpu.memory_space<vmem>>, vector<384x128xbf16>
    %cst_42 = arith.constant dense<0.000000e+00> : vector<8x128xf32>
    %108 = tpu.matmul %106, %107, %cst_42 {dimension_numbers = #tpu.dot_dimension_numbers<[1], [0], [0], [1], [0, 0, 1, 1], [], []>} : vector<8x384xbf16>, vector<384x128xbf16>, vector<8x128xf32> -> vector<8x128xf32>
    %c0_43 = arith.constant 0 : index
    %c0_44 = arith.constant 0 : index
    %109 = vector.load %arg6[%c0_43, %c0_44] : memref<1x128xf32, #tpu.memory_space<vmem>>, vector<1x128xf32>
    %110 = vector.broadcast %109 : vector<1x128xf32> to vector<8x128xf32>
    %111 = arith.addf %108, %110 : vector<8x128xf32>
    %c0_45 = arith.constant 0 : index
    %c0_46 = arith.constant 0 : index
    %112 = vector.load %arg7[%c0_45, %c0_46] : memref<8x128xf32, #tpu.memory_space<vmem>>, vector<8x128xf32>
    tpu.vector_store %arg7[%c0_45, %c0_46], %111 {strides = array<i32>} : memref<8x128xf32, #tpu.memory_space<vmem>>, vector<8x128xf32>,
    return
  }
}

</mosaic_0001>

<llo_original>
// kernel: model_forward.1
$region0: #{model_forward.1}
  #allocation0 [shape = 'u32[]', space=smem, size = 0x4, offset = 0x4, fixed_abs, tag = 'smem constant byte address 0x4 - core index']
  #allocation1 [shape = 'u32[144,128]{1,0:T(1,128)}', space=vmem, size = 0x12000, scoped, tag = 'internal scratch']
  %s0 = inlined_call_operand.vmem [shape: f32[12,288], index: 0, kind: input, shape index: {}]
  %s1 = inlined_call_operand.hbm [shape: bf16[576,384], index: 1, kind: input, shape index: {}]
  %s2 = inlined_call_operand.vmem [shape: f32[1,384], index: 2, kind: input, shape index: {}]
  %s3 = inlined_call_operand.vmem [shape: bf16[1152,128], index: 3, kind: input, shape index: {}]
  %s4 = inlined_call_operand.vmem [shape: f32[1,128], index: 4, kind: input, shape index: {}]
  %s5 = inlined_call_operand.hbm [shape: bf16[384,128], index: 5, kind: input, shape index: {}]
  %s6 = inlined_call_operand.vmem [shape: f32[1,128], index: 6, kind: input, shape index: {}]
  %s7 = inlined_call_operand.vmem [shape: f32[8,128], index: 7, kind: output, shape index: {}]
  %s8 = sld [smem:[#allocation0]]
  $region46: #{model_forward.1} parent=0
    _
  %s10 = ssub.s32 1, %s8
  %s11 = scalar_select 0, %s10, %s8
  $region1: #{model_forward.1} parent=0
    #allocation2 [shape = 'u8[442368]{0}', space=vmem, size = 0x6c000, scoped, tag = 'input window, operand 1, single buffered']
    #allocation3 [shape = 's32[1]{0}', space=sflag, size = 0x4, scoped, tag = 'scoped memory for model_forward.1']
    #allocation4 [shape = 'u8[98304]{0}', space=vmem, size = 0x18000, scoped, tag = 'input window, operand 5, single buffered']
    #allocation5 [shape = 's32[1]{0}', space=sflag, size = 0x4, scoped, tag = 'scoped memory for model_forward.1']
    %12 = vsyncpa [#allocation3], 0
    %13 = vsyncpa [#allocation5], 0
    // Predicated region
    $region2: #{model_forward.1} parent=1 // pred_check
      _
    $region3: #{model_forward.1} parent=1 // pred_check_branch
      %15 = sbr.rel (0) target = $region5
    $region4: #{model_forward.1} parent=1 // pred_region
      _
    $region5: #{model_forward.1} parent=1 // pred_fallthru
      _
    // Predicated region
    $region6: #{model_forward.1} parent=1 // pred_check
      _
    $region7: #{model_forward.1} parent=1 // pred_check_branch
      %17 = sbr.rel (0) target = $region9
    $region8: #{model_forward.1} parent=1 // pred_region
      %s19 = ssub.s32 13824, 13824
      %20 = vsyncadd [#allocation3], %s19
      %s21 = sshll.u32 [#allocation2], 4
      %s22 = int_to_ptr.vmem [resolvable:$true] %s21
      %27 = dma.hbm_to_vmem [thread:$0]  %s1, 13824, %s22, [#allocation3], 192, 192, 12
    $region9: #{model_forward.1} parent=1 // pred_fallthru
      _
    // Predicated region
    $region10: #{model_forward.1} parent=1 // pred_check
      _
    $region11: #{model_forward.1} parent=1 // pred_check_branch
      %29 = sbr.rel (0) target = $region13
    $region12: #{model_forward.1} parent=1 // pred_region
      _
    $region13: #{model_forward.1} parent=1 // pred_fallthru
      _
    // Predicated region
    $region14: #{model_forward.1} parent=1 // pred_check
      _
    $region15: #{model_forward.1} parent=1 // pred_check_branch
      %31 = sbr.rel (0) target = $region17
    $region16: #{model_forward.1} parent=1 // pred_region
      _
    $region17: #{model_forward.1} parent=1 // pred_fallthru
      _
    // Predicated region
    $region18: #{model_forward.1} parent=1 // pred_check
      _
    $region19: #{model_forward.1} parent=1 // pred_check_branch
      %33 = sbr.rel (0) target = $region21
    $region20: #{model_forward.1} parent=1 // pred_region
      _
    $region21: #{model_forward.1} parent=1 // pred_fallthru
      _
    // Predicated region
    $region22: #{model_forward.1} parent=1 // pred_check
      _
    $region23: #{model_forward.1} parent=1 // pred_check_branch
      %35 = sbr.rel (0) target = $region25
    $region24: #{model_forward.1} parent=1 // pred_region
      %s37 = ssub.s32 3072, 3072
      %38 = vsyncadd [#allocation5], %s37
      %s39 = sshll.u32 [#allocation4], 4
      %s40 = int_to_ptr.vmem [resolvable:$true] %s39
      %45 = dma.hbm_to_vmem [thread:$0]  %s5, 3072, %s40, [#allocation5], 64, 64, 4
    $region25: #{model_forward.1} parent=1 // pred_fallthru
      _
    // Predicated region
    $region26: #{model_forward.1} parent=1 // pred_check
      _
    $region27: #{model_forward.1} parent=1 // pred_check_branch
      %47 = sbr.rel (0) target = $region29
    $region28: #{model_forward.1} parent=1 // pred_region
      _
    $region29: #{model_forward.1} parent=1 // pred_fallthru
      _
    // Predicated region
    $region30: #{model_forward.1} parent=1 // pred_check
      _
    $region31: #{model_forward.1} parent=1 // pred_check_branch
      %49 = sbr.rel (0) target = $region33
    $region32: #{model_forward.1} parent=1 // pred_region
      %50 = dma.done [#allocation3], 13824
    $region33: #{model_forward.1} parent=1 // pred_fallthru
      _
    // Predicated region
    $region34: #{model_forward.1} parent=1 // pred_check
      _
    $region35: #{model_forward.1} parent=1 // pred_check_branch
      %52 = sbr.rel (0) target = $region37
    $region36: #{model_forward.1} parent=1 // pred_region
      %53 = dma.done [#allocation5], 3072
    $region37: #{model_forward.1} parent=1 // pred_fallthru
      _
    %v55 = vld [vmem:[%s0] sm:$0xff]
    %v56 = vld [vmem:[%s0 + $0x8] sm:$0xff]
    %v57 = vld [vmem:[%s0 + $0x10] sm:$0xff]
    %v58 = vld [vmem:[%s0 + $0x18] sm:$0xf]
    %v59 = vld [vmem:[%s0 + $0x20] sm:$0xf]
    %v60 = vld [vmem:[%s0 + $0x28] sm:$0xf]
    %vm67 = vcmask 1046528
    %v68 = vrot.slane %v55, 1
    %v69 = vrot.slane %v58, 1
    %v70 = vsel %vm67, %v68, %v69
    %v71 = vrot.slane %v56, 1
    %v72 = vrot.slane %v59, 1
    %v73 = vsel %vm67, %v71, %v72
    %v74 = vrot.slane %v57, 1
    %v75 = vrot.slane %v60, 1
    %v76 = vsel %vm67, %v74, %v75
    %77 = vrot.lane.b32.xlu0 %v70, 32
    %v78 = vpop.permute.xlu0 %77
    %79 = vrot.lane.b32.xlu0 %v73, 32
    %v80 = vpop.permute.xlu0 %79
    %81 = vrot.lane.b32.xlu0 %v76, 32
    %v82 = vpop.permute.xlu0 %81
    %83 = vrot.lane.b32.xlu0 %v69, 32
    %v84 = vpop.permute.xlu0 %83
    %85 = vrot.lane.b32.xlu0 %v72, 32
    %v86 = vpop.permute.xlu0 %85
    %87 = vrot.lane.b32.xlu0 %v75, 32
    %v88 = vpop.permute.xlu0 %87
    %vm89 = vcmask 261120
    %v90 = vsel %vm89, %v78, %v80
    %v91 = vsel %vm89, %v80, %v82
    %v92 = vsel %vm89, %v84, %v86
    %v93 = vsel %vm89, %v86, %v88
    %v100 = vsel %vm89, %v57, %v78
    %v101 = vsel %vm89, %v60, %v84
    %v102 = vpack.c.bf16 %v58, %v55
    %v103 = vpack.c.bf16 %v59, %v56
    %v104 = vpack.c.bf16 %v101, %v100
    %v105 = vpack.c.bf16 %v92, %v90
    %v106 = vpack.c.bf16 %v93, %v91
    %v107 = vld [vmem:[#allocation2] sm:$0xff]
    %v108 = vld [vmem:[#allocation2 + $0x8] sm:$0xf]
    %v109 = vld [vmem:[#allocation2 + $0xc] sm:$0xff]
    %v110 = vld [vmem:[#allocation2 + $0x14] sm:$0xf]
    %v111 = vld [vmem:[#allocation2 + $0x18] sm:$0xff]
    %v112 = vld [vmem:[#allocation2 + $0x20] sm:$0xf]
    %v113 = vld [vmem:[#allocation2 + $0x24] sm:$0xff]
    %v114 = vld [vmem:[#allocation2 + $0x2c] sm:$0xf]
    %v115 = vld [vmem:[#allocation2 + $0x30] sm:$0xff]
    %v116 = vld [vmem:[#allocation2 + $0x38] sm:$0xf]
    %v117 = vld [vmem:[#allocation2 + $0x3c] sm:$0xff]
    %v118 = vld [vmem:[#allocation2 + $0x44] sm:$0xf]
    %v119 = vld [vmem:[#allocation2 + $0x48] sm:$0xff]
    %v120 = vld [vmem:[#allocation2 + $0x50] sm:$0xf]
    %v121 = vld [vmem:[#allocation2 + $0x54] sm:$0xff]
    %v122 = vld [vmem:[#allocation2 + $0x5c] sm:$0xf]
    %v123 = vld [vmem:[#allocation2 + $0x60] sm:$0xff]
    %v124 = vld [vmem:[#allocation2 + $0x68] sm:$0xf]
    %v125 = vld [vmem:[#allocation2 + $0x6c] sm:$0xff]
    %v126 = vld [vmem:[#allocation2 + $0x74] sm:$0xf]
    %v127 = vld [vmem:[#allocation2 + $0x78] sm:$0xff]
    %v128 = vld [vmem:[#allocation2 + $0x80] sm:$0xf]
    %v129 = vld [vmem:[#allocation2 + $0x84] sm:$0xff]
    %v130 = vld [vmem:[#allocation2 + $0x8c] sm:$0xf]
    %v131 = vld [vmem:[#allocation2 + $0x90] sm:$0xff]
    %v132 = vld [vmem:[#allocation2 + $0x98] sm:$0xf]
    %v133 = vld [vmem:[#allocation2 + $0x9c] sm:$0xff]
    %v134 = vld [vmem:[#allocation2 + $0xa4] sm:$0xf]
    %v135 = vld [vmem:[#allocation2 + $0xa8] sm:$0xff]
    %v136 = vld [vmem:[#allocation2 + $0xb0] sm:$0xf]
    %v137 = vld [vmem:[#allocation2 + $0xb4] sm:$0xff]
    %v138 = vld [vmem:[#allocation2 + $0xbc] sm:$0xf]
    %v139 = vld [vmem:[#allocation2 + $0xc0] sm:$0xff]
    %v140 = vld [vmem:[#allocation2 + $0xc8] sm:$0xf]
    %v141 = vld [vmem:[#allocation2 + $0xcc] sm:$0xff]
    %v142 = vld [vmem:[#allocation2 + $0xd4] sm:$0xf]
    %v143 = vld [vmem:[#allocation2 + $0xd8] sm:$0xff]
    %v144 = vld [vmem:[#allocation2 + $0xe0] sm:$0xf]
    %v145 = vld [vmem:[#allocation2 + $0xe4] sm:$0xff]
    %v146 = vld [vmem:[#allocation2 + $0xec] sm:$0xf]
    %v147 = vld [vmem:[#allocation2 + $0xf0] sm:$0xff]
    %v148 = vld [vmem:[#allocation2 + $0xf8] sm:$0xf]
    %v149 = vld [vmem:[#allocation2 + $0xfc] sm:$0xff]
    %v150 = vld [vmem:[#allocation2 + $0x104] sm:$0xf]
    %v151 = vld [vmem:[#allocation2 + $0x108] sm:$0xff]
    %v152 = vld [vmem:[#allocation2 + $0x110] sm:$0xf]
    %v153 = vld [vmem:[#allocation2 + $0x114] sm:$0xff]
    %v154 = vld [vmem:[#allocation2 + $0x11c] sm:$0xf]
    %v155 = vld [vmem:[#allocation2 + $0x120] sm:$0xff]
    %v156 = vld [vmem:[#allocation2 + $0x128] sm:$0xf]
    %v157 = vld [vmem:[#allocation2 + $0x12c] sm:$0xff]
    %v158 = vld [vmem:[#allocation2 + $0x134] sm:$0xf]
    %v159 = vld [vmem:[#allocation2 + $0x138] sm:$0xff]
    %v160 = vld [vmem:[#allocation2 + $0x140] sm:$0xf]
    %v161 = vld [vmem:[#allocation2 + $0x144] sm:$0xff]
    %v162 = vld [vmem:[#allocation2 + $0x14c] sm:$0xf]
    %v163 = vld [vmem:[#allocation2 + $0x150] sm:$0xff]
    %v164 = vld [vmem:[#allocation2 + $0x158] sm:$0xf]
    %v165 = vld [vmem:[#allocation2 + $0x15c] sm:$0xff]
    %v166 = vld [vmem:[#allocation2 + $0x164] sm:$0xf]
    %v167 = vld [vmem:[#allocation2 + $0x168] sm:$0xff]
    %v168 = vld [vmem:[#allocation2 + $0x170] sm:$0xf]
    %v169 = vld [vmem:[#allocation2 + $0x174] sm:$0xff]
    %v170 = vld [vmem:[#allocation2 + $0x17c] sm:$0xf]
    %v171 = vld [vmem:[#allocation2 + $0x180] sm:$0xff]
    %v172 = vld [vmem:[#allocation2 + $0x188] sm:$0xf]
    %v173 = vld [vmem:[#allocation2 + $0x18c] sm:$0xff]
    %v174 = vld [vmem:[#allocation2 + $0x194] sm:$0xf]
    %v175 = vld [vmem:[#allocation2 + $0x198] sm:$0xff]
    %v176 = vld [vmem:[#allocation2 + $0x1a0] sm:$0xf]
    %v177 = vld [vmem:[#allocation2 + $0x1a4] sm:$0xff]
    %v178 = vld [vmem:[#allocation2 + $0x1ac] sm:$0xf]
    %v179 = vld [vmem:[#allocation2 + $0x1b0] sm:$0xff]
    %v180 = vld [vmem:[#allocation2 + $0x1b8] sm:$0xf]
    %v181 = vld [vmem:[#allocation2 + $0x1bc] sm:$0xff]
    %v182 = vld [vmem:[#allocation2 + $0x1c4] sm:$0xf]
    %v183 = vld [vmem:[#allocation2 + $0x1c8] sm:$0xff]
    %v184 = vld [vmem:[#allocation2 + $0x1d0] sm:$0xf]
    %v185 = vld [vmem:[#allocation2 + $0x1d4] sm:$0xff]
    %v186 = vld [vmem:[#allocation2 + $0x1dc] sm:$0xf]
    %v187 = vld [vmem:[#allocation2 + $0x1e0] sm:$0xff]
    %v188 = vld [vmem:[#allocation2 + $0x1e8] sm:$0xf]
    %v189 = vld [vmem:[#allocation2 + $0x1ec] sm:$0xff]
    %v190 = vld [vmem:[#allocation2 + $0x1f4] sm:$0xf]
    %v191 = vld [vmem:[#allocation2 + $0x1f8] sm:$0xff]
    %v192 = vld [vmem:[#allocation2 + $0x200] sm:$0xf]
    %v193 = vld [vmem:[#allocation2 + $0x204] sm:$0xff]
    %v194 = vld [vmem:[#allocation2 + $0x20c] sm:$0xf]
    %v195 = vld [vmem:[#allocation2 + $0x210] sm:$0xff]
    %v196 = vld [vmem:[#allocation2 + $0x218] sm:$0xf]
    %v197 = vld [vmem:[#allocation2 + $0x21c] sm:$0xff]
    %v198 = vld [vmem:[#allocation2 + $0x224] sm:$0xf]
    %v199 = vld [vmem:[#allocation2 + $0x228] sm:$0xff]
    %v200 = vld [vmem:[#allocation2 + $0x230] sm:$0xf]
    %v201 = vld [vmem:[#allocation2 + $0x234] sm:$0xff]
    %v202 = vld [vmem:[#allocation2 + $0x23c] sm:$0xf]
    %v203 = vld [vmem:[#allocation2 + $0x240] sm:$0xff]
    %v204 = vld [vmem:[#allocation2 + $0x248] sm:$0xf]
    %v205 = vld [vmem:[#allocation2 + $0x24c] sm:$0xff]
    %v206 = vld [vmem:[#allocation2 + $0x254] sm:$0xf]
    %v207 = vld [vmem:[#allocation2 + $0x258] sm:$0xff]
    %v208 = vld [vmem:[#allocation2 + $0x260] sm:$0xf]
    %v209 = vld [vmem:[#allocation2 + $0x264] sm:$0xff]
    %v210 = vld [vmem:[#allocation2 + $0x26c] sm:$0xf]
    %v211 = vld [vmem:[#allocation2 + $0x270] sm:$0xff]
    %v212 = vld [vmem:[#allocation2 + $0x278] sm:$0xf]
    %v213 = vld [vmem:[#allocation2 + $0x27c] sm:$0xff]
    %v214 = vld [vmem:[#allocation2 + $0x284] sm:$0xf]
    %v215 = vld [vmem:[#allocation2 + $0x288] sm:$0xff]
    %v216 = vld [vmem:[#allocation2 + $0x290] sm:$0xf]
    %v217 = vld [vmem:[#allocation2 + $0x294] sm:$0xff]
    %v218 = vld [vmem:[#allocation2 + $0x29c] sm:$0xf]
    %v219 = vld [vmem:[#allocation2 + $0x2a0] sm:$0xff]
    %v220 = vld [vmem:[#allocation2 + $0x2a8] sm:$0xf]
    %v221 = vld [vmem:[#allocation2 + $0x2ac] sm:$0xff]
    %v222 = vld [vmem:[#allocation2 + $0x2b4] sm:$0xf]
    %v223 = vld [vmem:[#allocation2 + $0x2b8] sm:$0xff]
    %v224 = vld [vmem:[#allocation2 + $0x2c0] sm:$0xf]
    %v225 = vld [vmem:[#allocation2 + $0x2c4] sm:$0xff]
    %v226 = vld [vmem:[#allocation2 + $0x2cc] sm:$0xf]
    %v227 = vld [vmem:[#allocation2 + $0x2d0] sm:$0xff]
    %v228 = vld [vmem:[#allocation2 + $0x2d8] sm:$0xf]
    %v229 = vld [vmem:[#allocation2 + $0x2dc] sm:$0xff]
    %v230 = vld [vmem:[#allocation2 + $0x2e4] sm:$0xf]
    %v231 = vld [vmem:[#allocation2 + $0x2e8] sm:$0xff]
    %v232 = vld [vmem:[#allocation2 + $0x2f0] sm:$0xf]
    %v233 = vld [vmem:[#allocation2 + $0x2f4] sm:$0xff]
    %v234 = vld [vmem:[#allocation2 + $0x2fc] sm:$0xf]
    %v235 = vld [vmem:[#allocation2 + $0x300] sm:$0xff]
    %v236 = vld [vmem:[#allocation2 + $0x308] sm:$0xf]
    %v237 = vld [vmem:[#allocation2 + $0x30c] sm:$0xff]
    %v238 = vld [vmem:[#allocation2 + $0x314] sm:$0xf]
    %v239 = vld [vmem:[#allocation2 + $0x318] sm:$0xff]
    %v240 = vld [vmem:[#allocation2 + $0x320] sm:$0xf]
    %v241 = vld [vmem:[#allocation2 + $0x324] sm:$0xff]
    %v242 = vld [vmem:[#allocation2 + $0x32c] sm:$0xf]
    %v243 = vld [vmem:[#allocation2 + $0x330] sm:$0xff]
    %v244 = vld [vmem:[#allocation2 + $0x338] sm:$0xf]
    %v245 = vld [vmem:[#allocation2 + $0x33c] sm:$0xff]
    %v246 = vld [vmem:[#allocation2 + $0x344] sm:$0xf]
    %v247 = vld [vmem:[#allocation2 + $0x348] sm:$0xff]
    %v248 = vld [vmem:[#allocation2 + $0x350] sm:$0xf]
    %v249 = vld [vmem:[#allocation2 + $0x354] sm:$0xff]
    %v250 = vld [vmem:[#allocation2 + $0x35c] sm:$0xf]
    %v251 = vld [vmem:[%s2] sm:$0x7]
    %v253 = vlaneseq
    %v254 = vshrl.u32 %v253, 7
    %v255 = vsub.s32 0, %v254
    %v256 = vrot.slane %v251, %v255
    %v257 = vlaneseq
    %v258 = vshrl.u32 %v257, 7
    %v259 = vsub.s32 1, %v258
    %v260 = vrot.slane %v251, %v259
    %v261 = vlaneseq
    %v262 = vshrl.u32 %v261, 7
    %v263 = vsub.s32 2, %v262
    %v264 = vrot.slane %v251, %v263
    %v412 = vunpack.c.l.b16 %v107
    %v413 = vunpack.c.h.b16 %v107
    %v414 = vunpack.c.l.b16 %v108
    %v415 = vunpack.c.l.b16 %v109
    %v416 = vunpack.c.h.b16 %v109
    %v417 = vunpack.c.l.b16 %v110
    %v418 = vunpack.c.l.b16 %v111
    %v419 = vunpack.c.h.b16 %v111
    %v420 = vunpack.c.l.b16 %v112
    %v421 = vunpack.c.l.b16 %v113
    %v422 = vunpack.c.h.b16 %v113
    %v423 = vunpack.c.l.b16 %v114
    %v424 = vunpack.c.l.b16 %v115
    %v425 = vunpack.c.h.b16 %v115
    %v426 = vunpack.c.l.b16 %v116
    %v427 = vunpack.c.l.b16 %v117
    %v428 = vunpack.c.h.b16 %v117
    %v429 = vunpack.c.l.b16 %v118
    %v430 = vunpack.c.l.b16 %v119
    %v431 = vunpack.c.h.b16 %v119
    %v432 = vunpack.c.l.b16 %v120
    %v433 = vunpack.c.l.b16 %v121
    %v434 = vunpack.c.h.b16 %v121
    %v435 = vunpack.c.l.b16 %v122
    %v436 = vunpack.c.l.b16 %v123
    %v437 = vunpack.c.h.b16 %v123
    %v438 = vunpack.c.l.b16 %v124
    %v439 = vunpack.c.l.b16 %v125
    %v440 = vunpack.c.h.b16 %v125
    %v441 = vunpack.c.l.b16 %v126
    %v442 = vunpack.c.l.b16 %v127
    %v443 = vunpack.c.h.b16 %v127
    %v444 = vunpack.c.l.b16 %v128
    %v445 = vunpack.c.l.b16 %v129
    %v446 = vunpack.c.h.b16 %v129
    %v447 = vunpack.c.l.b16 %v130
    %v448 = vunpack.c.l.b16 %v131
    %v449 = vunpack.c.h.b16 %v131
    %v450 = vunpack.c.l.b16 %v132
    %v451 = vunpack.c.l.b16 %v133
    %v452 = vunpack.c.h.b16 %v133
    %v453 = vunpack.c.l.b16 %v134
    %v454 = vunpack.c.l.b16 %v135
    %v455 = vunpack.c.h.b16 %v135
    %v456 = vunpack.c.l.b16 %v136
    %v457 = vunpack.c.l.b16 %v137
    %v458 = vunpack.c.h.b16 %v137
    %v459 = vunpack.c.l.b16 %v138
    %v460 = vunpack.c.l.b16 %v139
    %v461 = vunpack.c.h.b16 %v139
    %v462 = vunpack.c.l.b16 %v140
    %v463 = vunpack.c.l.b16 %v141
    %v464 = vunpack.c.h.b16 %v141
    %v465 = vunpack.c.l.b16 %v142
    %v466 = vunpack.c.l.b16 %v143
    %v467 = vunpack.c.h.b16 %v143
    %v468 = vunpack.c.l.b16 %v144
    %v469 = vunpack.c.l.b16 %v145
    %v470 = vunpack.c.h.b16 %v145
    %v471 = vunpack.c.l.b16 %v146
    %v472 = vunpack.c.l.b16 %v147
    %v473 = vunpack.c.h.b16 %v147
    %v474 = vunpack.c.l.b16 %v148
    %v475 = vunpack.c.l.b16 %v149
    %v476 = vunpack.c.h.b16 %v149
    %v477 = vunpack.c.l.b16 %v150
    %v478 = vunpack.c.l.b16 %v151
    %v479 = vunpack.c.h.b16 %v151
    %v480 = vunpack.c.l.b16 %v152
    %v481 = vunpack.c.l.b16 %v153
    %v482 = vunpack.c.h.b16 %v153
    %v483 = vunpack.c.l.b16 %v154
    %v484 = vunpack.c.l.b16 %v155
    %v485 = vunpack.c.h.b16 %v155
    %v486 = vunpack.c.l.b16 %v156
    %v487 = vunpack.c.l.b16 %v157
    %v488 = vunpack.c.h.b16 %v157
    %v489 = vunpack.c.l.b16 %v158
    %v490 = vunpack.c.l.b16 %v159
    %v491 = vunpack.c.h.b16 %v159
    %v492 = vunpack.c.l.b16 %v160
    %v493 = vunpack.c.l.b16 %v161
    %v494 = vunpack.c.h.b16 %v161
    %v495 = vunpack.c.l.b16 %v162
    %v496 = vunpack.c.l.b16 %v163
    %v497 = vunpack.c.h.b16 %v163
    %v498 = vunpack.c.l.b16 %v164
    %v499 = vunpack.c.l.b16 %v165
    %v500 = vunpack.c.h.b16 %v165
    %v501 = vunpack.c.l.b16 %v166
    %v502 = vunpack.c.l.b16 %v167
    %v503 = vunpack.c.h.b16 %v167
    %v504 = vunpack.c.l.b16 %v168
    %v505 = vunpack.c.l.b16 %v169
    %v506 = vunpack.c.h.b16 %v169
    %v507 = vunpack.c.l.b16 %v170
    %v508 = vunpack.c.l.b16 %v171
    %v509 = vunpack.c.h.b16 %v171
    %v510 = vunpack.c.l.b16 %v172
    %v511 = vunpack.c.l.b16 %v173
    %v512 = vunpack.c.h.b16 %v173
    %v513 = vunpack.c.l.b16 %v174
    %v514 = vunpack.c.l.b16 %v175
    %v515 = vunpack.c.h.b16 %v175
    %v516 = vunpack.c.l.b16 %v176
    %v517 = vunpack.c.l.b16 %v177
    %v518 = vunpack.c.h.b16 %v177
    %v519 = vunpack.c.l.b16 %v178
    %v520 = vunpack.c.l.b16 %v179
    %v521 = vunpack.c.h.b16 %v179
    %v522 = vunpack.c.l.b16 %v180
    %v523 = vunpack.c.l.b16 %v181
    %v524 = vunpack.c.h.b16 %v181
    %v525 = vunpack.c.l.b16 %v182
    %v526 = vunpack.c.l.b16 %v183
    %v527 = vunpack.c.h.b16 %v183
    %v528 = vunpack.c.l.b16 %v184
    %v529 = vunpack.c.l.b16 %v185
    %v530 = vunpack.c.h.b16 %v185
    %v531 = vunpack.c.l.b16 %v186
    %v532 = vunpack.c.l.b16 %v187
    %v533 = vunpack.c.h.b16 %v187
    %v534 = vunpack.c.l.b16 %v188
    %v535 = vunpack.c.l.b16 %v189
    %v536 = vunpack.c.h.b16 %v189
    %v537 = vunpack.c.l.b16 %v190
    %v538 = vunpack.c.l.b16 %v191
    %v539 = vunpack.c.h.b16 %v191
    %v540 = vunpack.c.l.b16 %v192
    %v541 = vunpack.c.l.b16 %v193
    %v542 = vunpack.c.h.b16 %v193
    %v543 = vunpack.c.l.b16 %v194
    %v544 = vunpack.c.l.b16 %v195
    %v545 = vunpack.c.h.b16 %v195
    %v546 = vunpack.c.l.b16 %v196
    %v547 = vunpack.c.l.b16 %v197
    %v548 = vunpack.c.h.b16 %v197
    %v549 = vunpack.c.l.b16 %v198
    %v550 = vunpack.c.l.b16 %v199
    %v551 = vunpack.c.h.b16 %v199
    %v552 = vunpack.c.l.b16 %v200
    %v553 = vunpack.c.l.b16 %v201
    %v554 = vunpack.c.h.b16 %v201
    %v555 = vunpack.c.l.b16 %v202
    %v556 = vunpack.c.l.b16 %v203
    %v557 = vunpack.c.h.b16 %v203
    %v558 = vunpack.c.l.b16 %v204
    %v559 = vunpack.c.l.b16 %v205
    %v560 = vunpack.c.h.b16 %v205
    %v561 = vunpack.c.l.b16 %v206
    %v562 = vunpack.c.l.b16 %v207
    %v563 = vunpack.c.h.b16 %v207
    %v564 = vunpack.c.l.b16 %v208
    %v565 = vunpack.c.l.b16 %v209
    %v566 = vunpack.c.h.b16 %v209
    %v567 = vunpack.c.l.b16 %v210
    %v568 = vunpack.c.l.b16 %v211
    %v569 = vunpack.c.h.b16 %v211
    %v570 = vunpack.c.l.b16 %v212
    %v571 = vunpack.c.l.b16 %v213
    %v572 = vunpack.c.h.b16 %v213
    %v573 = vunpack.c.l.b16 %v214
    %v574 = vunpack.c.l.b16 %v215
    %v575 = vunpack.c.h.b16 %v215
    %v576 = vunpack.c.l.b16 %v216
    %v577 = vunpack.c.l.b16 %v217
    %v578 = vunpack.c.h.b16 %v217
    %v579 = vunpack.c.l.b16 %v218
    %v580 = vunpack.c.l.b16 %v219
    %v581 = vunpack.c.h.b16 %v219
    %v582 = vunpack.c.l.b16 %v220
    %v583 = vunpack.c.l.b16 %v221
    %v584 = vunpack.c.h.b16 %v221
    %v585 = vunpack.c.l.b16 %v222
    %v586 = vunpack.c.l.b16 %v223
    %v587 = vunpack.c.h.b16 %v223
    %v588 = vunpack.c.l.b16 %v224
    %v589 = vunpack.c.l.b16 %v225
    %v590 = vunpack.c.h.b16 %v225
    %v591 = vunpack.c.l.b16 %v226
    %v592 = vunpack.c.l.b16 %v227
    %v593 = vunpack.c.h.b16 %v227
    %v594 = vunpack.c.l.b16 %v228
    %v595 = vunpack.c.l.b16 %v229
    %v596 = vunpack.c.h.b16 %v229
    %v597 = vunpack.c.l.b16 %v230
    %v598 = vunpack.c.l.b16 %v231
    %v599 = vunpack.c.h.b16 %v231
    %v600 = vunpack.c.l.b16 %v232
    %v601 = vunpack.c.l.b16 %v233
    %v602 = vunpack.c.h.b16 %v233
    %v603 = vunpack.c.l.b16 %v234
    %v604 = vunpack.c.l.b16 %v235
    %v605 = vunpack.c.h.b16 %v235
    %v606 = vunpack.c.l.b16 %v236
    %v607 = vunpack.c.l.b16 %v237
    %v608 = vunpack.c.h.b16 %v237
    %v609 = vunpack.c.l.b16 %v238
    %v610 = vunpack.c.l.b16 %v239
    %v611 = vunpack.c.h.b16 %v239
    %v612 = vunpack.c.l.b16 %v240
    %v613 = vunpack.c.l.b16 %v241
    %v614 = vunpack.c.h.b16 %v241
    %v615 = vunpack.c.l.b16 %v242
    %v616 = vunpack.c.l.b16 %v243
    %v617 = vunpack.c.h.b16 %v243
    %v618 = vunpack.c.l.b16 %v244
    %v619 = vunpack.c.l.b16 %v245
    %v620 = vunpack.c.h.b16 %v245
    %v621 = vunpack.c.l.b16 %v246
    %v622 = vunpack.c.l.b16 %v247
    %v623 = vunpack.c.h.b16 %v247
    %v624 = vunpack.c.l.b16 %v248
    %v625 = vunpack.c.l.b16 %v249
    %v626 = vunpack.c.h.b16 %v249
    %v627 = vunpack.c.l.b16 %v250
    %v628 = vpack.c.b16 %v415, %v412
    %v629 = vpack.c.b16 %v416, %v413
    %v630 = vpack.c.b16 %v417, %v414
    %v631 = vpack.c.b16 %v421, %v418
    %v632 = vpack.c.b16 %v422, %v419
    %v633 = vpack.c.b16 %v423, %v420
    %v634 = vpack.c.b16 %v427, %v424
    %v635 = vpack.c.b16 %v428, %v425
    %v636 = vpack.c.b16 %v429, %v426
    %v637 = vpack.c.b16 %v433, %v430
    %v638 = vpack.c.b16 %v434, %v431
    %v639 = vpack.c.b16 %v435, %v432
    %v640 = vpack.c.b16 %v439, %v436
    %v641 = vpack.c.b16 %v440, %v437
    %v642 = vpack.c.b16 %v441, %v438
    %v643 = vpack.c.b16 %v445, %v442
    %v644 = vpack.c.b16 %v446, %v443
    %v645 = vpack.c.b16 %v447, %v444
    %v646 = vpack.c.b16 %v451, %v448
    %v647 = vpack.c.b16 %v452, %v449
    %v648 = vpack.c.b16 %v453, %v450
    %v649 = vpack.c.b16 %v457, %v454
    %v650 = vpack.c.b16 %v458, %v455
    %v651 = vpack.c.b16 %v459, %v456
    %v652 = vpack.c.b16 %v463, %v460
    %v653 = vpack.c.b16 %v464, %v461
    %v654 = vpack.c.b16 %v465, %v462
    %v655 = vpack.c.b16 %v469, %v466
    %v656 = vpack.c.b16 %v470, %v467
    %v657 = vpack.c.b16 %v471, %v468
    %v658 = vpack.c.b16 %v475, %v472
    %v659 = vpack.c.b16 %v476, %v473
    %v660 = vpack.c.b16 %v477, %v474
    %v661 = vpack.c.b16 %v481, %v478
    %v662 = vpack.c.b16 %v482, %v479
    %v663 = vpack.c.b16 %v483, %v480
    %v664 = vpack.c.b16 %v487, %v484
    %v665 = vpack.c.b16 %v488, %v485
    %v666 = vpack.c.b16 %v489, %v486
    %v667 = vpack.c.b16 %v493, %v490
    %v668 = vpack.c.b16 %v494, %v491
    %v669 = vpack.c.b16 %v495, %v492
    %v670 = vpack.c.b16 %v499, %v496
    %v671 = vpack.c.b16 %v500, %v497
    %v672 = vpack.c.b16 %v501, %v498
    %v673 = vpack.c.b16 %v505, %v502
    %v674 = vpack.c.b16 %v506, %v503
    %v675 = vpack.c.b16 %v507, %v504
    %v676 = vpack.c.b16 %v511, %v508
    %v677 = vpack.c.b16 %v512, %v509
    %v678 = vpack.c.b16 %v513, %v510
    %v679 = vpack.c.b16 %v517, %v514
    %v680 = vpack.c.b16 %v518, %v515
    %v681 = vpack.c.b16 %v519, %v516
    %v682 = vpack.c.b16 %v523, %v520
    %v683 = vpack.c.b16 %v524, %v521
    %v684 = vpack.c.b16 %v525, %v522
    %v685 = vpack.c.b16 %v529, %v526
    %v686 = vpack.c.b16 %v530, %v527
    %v687 = vpack.c.b16 %v531, %v528
    %v688 = vpack.c.b16 %v535, %v532
    %v689 = vpack.c.b16 %v536, %v533
    %v690 = vpack.c.b16 %v537, %v534
    %v691 = vpack.c.b16 %v541, %v538
    %v692 = vpack.c.b16 %v542, %v539
    %v693 = vpack.c.b16 %v543, %v540
    %v694 = vpack.c.b16 %v547, %v544
    %v695 = vpack.c.b16 %v548, %v545
    %v696 = vpack.c.b16 %v549, %v546
    %v697 = vpack.c.b16 %v553, %v550
    %v698 = vpack.c.b16 %v554, %v551
    %v699 = vpack.c.b16 %v555, %v552
    %v700 = vpack.c.b16 %v559, %v556
    %v701 = vpack.c.b16 %v560, %v557
    %v702 = vpack.c.b16 %v561, %v558
    %v703 = vpack.c.b16 %v565, %v562
    %v704 = vpack.c.b16 %v566, %v563
    %v705 = vpack.c.b16 %v567, %v564
    %v706 = vpack.c.b16 %v571, %v568
    %v707 = vpack.c.b16 %v572, %v569
    %v708 = vpack.c.b16 %v573, %v570
    %v709 = vpack.c.b16 %v577, %v574
    %v710 = vpack.c.b16 %v578, %v575
    %v711 = vpack.c.b16 %v579, %v576
    %v712 = vpack.c.b16 %v583, %v580
    %v713 = vpack.c.b16 %v584, %v581
    %v714 = vpack.c.b16 %v585, %v582
    %v715 = vpack.c.b16 %v589, %v586
    %v716 = vpack.c.b16 %v590, %v587
    %v717 = vpack.c.b16 %v591, %v588
    %v718 = vpack.c.b16 %v595, %v592
    %v719 = vpack.c.b16 %v596, %v593
    %v720 = vpack.c.b16 %v597, %v594
    %v721 = vpack.c.b16 %v601, %v598
    %v722 = vpack.c.b16 %v602, %v599
    %v723 = vpack.c.b16 %v603, %v600
    %v724 = vpack.c.b16 %v607, %v604
    %v725 = vpack.c.b16 %v608, %v605
    %v726 = vpack.c.b16 %v609, %v606
    %v727 = vpack.c.b16 %v613, %v610
    %v728 = vpack.c.b16 %v614, %v611
    %v729 = vpack.c.b16 %v615, %v612
    %v730 = vpack.c.b16 %v619, %v616
    %v731 = vpack.c.b16 %v620, %v617
    %v732 = vpack.c.b16 %v621, %v618
    %v733 = vpack.c.b16 %v625, %v622
    %v734 = vpack.c.b16 %v626, %v623
    %v735 = vpack.c.b16 %v627, %v624
    %vm844 = vcmask 523264
    %v846 = vsel %vm844, %v106, 0
    %848 = vmatprep.subr.bf16.mxu0 %v629
    %849 = vmatpush1.bf16.msra.mxu0 %v628
    %850 = vmatprep.subr.bf16.mxu0 %v632
    %851 = vmatpush1.bf16.msra.mxu0 %v631
    %852 = vmatprep.subr.bf16.mxu0 %v635
    %853 = vmatpush1.bf16.msra.mxu0 %v634
    %854 = vmatprep.subr.bf16.mxu0 %v638
    %855 = vmatpush1.bf16.msra.mxu0 %v637
    %856 = vmatprep.subr.bf16.mxu0 %v641
    %857 = vmatpush1.bf16.msra.mxu0 %v640
    %858 = vmatprep.subr.bf16.mxu0 %v644
    %859 = vmatpush1.bf16.msra.mxu0 %v643
    %860 = vmatprep.subr.bf16.mxu0 %v647
    %861 = vmatpush1.bf16.msra.mxu0 %v646
    %862 = vmatprep.subr.bf16.mxu0 %v650
    %863 = vmatpush1.bf16.msra.mxu0 %v649
    %864 = vmatprep.subr.bf16.mxu0 %v653
    %865 = vmatpush1.bf16.msra.mxu0 %v652
    %866 = vmatprep.subr.bf16.mxu0 %v656
    %867 = vmatpush1.bf16.msra.mxu0 %v655
    %868 = vmatprep.subr.bf16.mxu0 %v659
    %869 = vmatpush1.bf16.msra.mxu0 %v658
    %870 = vmatprep.subr.bf16.mxu0 %v662
    %871 = vmatpush1.bf16.msra.mxu0 %v661
    %872 = vmatprep.subr.bf16.mxu0 %v665
    %873 = vmatpush1.bf16.msra.mxu0 %v664
    %874 = vmatprep.subr.bf16.mxu0 %v668
    %875 = vmatpush1.bf16.msra.mxu0 %v667
    %876 = vmatprep.subr.bf16.mxu0 %v671
    %877 = vmatpush1.bf16.msra.mxu0 %v670
    %878 = vmatprep.subr.bf16.mxu0 %v674
    %879 = vmatpush1.bf16.msra.mxu0 %v673
    %880 = vmatprep.mubr.bf16.mxu0 %v103
    %881 = vmatmul.mubr.bf16.gmra.mrb[0].mxu0 %v102
    %v882 = vpop.f32.mrb[0].mxu0
    %v883 = vadd.f32 %v256, %v882
    %v884 = vpop.f32.mrb[0].mxu0
    %v885 = vadd.f32 %v260, %v884
    %v886 = vpop.f32.mrb[0].mxu0
    %v887 = vadd.f32 %v256, %v886
    %v888 = vpop.f32.mrb[0].mxu0
    %v889 = vadd.f32 %v260, %v888
    %890 = vdwg.mxu0
    %891 = vmatprep.subr.bf16.mxu0 %v677
    %892 = vmatpush1.bf16.msra.mxu0 %v676
    %893 = vmatprep.subr.bf16.mxu0 %v680
    %894 = vmatpush1.bf16.msra.mxu0 %v679
    %895 = vmatprep.subr.bf16.mxu0 %v683
    %896 = vmatpush1.bf16.msra.mxu0 %v682
    %897 = vmatprep.subr.bf16.mxu0 %v686
    %898 = vmatpush1.bf16.msra.mxu0 %v685
    %899 = vmatprep.subr.bf16.mxu0 %v689
    %900 = vmatpush1.bf16.msra.mxu0 %v688
    %901 = vmatprep.subr.bf16.mxu0 %v692
    %902 = vmatpush1.bf16.msra.mxu0 %v691
    %903 = vmatprep.subr.bf16.mxu0 %v695
    %904 = vmatpush1.bf16.msra.mxu0 %v694
    %905 = vmatprep.subr.bf16.mxu0 %v698
    %906 = vmatpush1.bf16.msra.mxu0 %v697
    %907 = vmatprep.subr.bf16.mxu0 %v701
    %908 = vmatpush1.bf16.msra.mxu0 %v700
    %909 = vmatprep.subr.bf16.mxu0 %v704
    %910 = vmatpush1.bf16.msra.mxu0 %v703
    %911 = vmatprep.subr.bf16.mxu0 %v707
    %912 = vmatpush1.bf16.msra.mxu0 %v706
    %913 = vmatprep.subr.bf16.mxu0 %v710
    %914 = vmatpush1.bf16.msra.mxu0 %v709
    %915 = vmatprep.subr.bf16.mxu0 %v713
    %916 = vmatpush1.bf16.msra.mxu0 %v712
    %917 = vmatprep.subr.bf16.mxu0 %v716
    %918 = vmatpush1.bf16.msra.mxu0 %v715
    %919 = vmatprep.subr.bf16.mxu0 %v719
    %920 = vmatpush1.bf16.msra.mxu0 %v718
    %921 = vmatprep.subr.bf16.mxu0 %v722
    %922 = vmatpush1.bf16.msra.mxu0 %v721
    %923 = vmatprep.mubr.bf16.mxu0 %v105
    %924 = vmatmul.mubr.bf16.gmra.mrb[0].mxu0 %v104
    %v925 = vpop.f32.mrb[0].mxu0
    %v926 = vadd.f32 %v883, %v925
    %v927 = vpop.f32.mrb[0].mxu0
    %v928 = vadd.f32 %v885, %v927
    %v929 = vpop.f32.mrb[0].mxu0
    %v930 = vadd.f32 %v887, %v929
    %v931 = vpop.f32.mrb[0].mxu0
    %v932 = vadd.f32 %v889, %v931
    %933 = vdwg.mxu0
    %934 = vmatprep.subr.bf16.mxu0 %v725
    %935 = vmatpush1.bf16.msra.mxu0 %v724
    %936 = vmatprep.subr.bf16.mxu0 %v728
    %937 = vmatpush1.bf16.msra.mxu0 %v727
    %938 = vmatprep.subr.bf16.mxu0 %v731
    %939 = vmatpush1.bf16.msra.mxu0 %v730
    %940 = vmatprep.subr.bf16.mxu0 %v734
    %941 = vmatpush1.bf16.msra.mxu0 %v733
    %942 = vmatprep.subr.bf16.mxu0 0
    %943 = vmatpush1.bf16.msra.mxu0 0
    %944 = vmatprep.subr.bf16.mxu0 0
    %945 = vmatpush1.bf16.msra.mxu0 0
    %946 = vmatprep.subr.bf16.mxu0 0
    %947 = vmatpush1.bf16.msra.mxu0 0
    %948 = vmatprep.subr.bf16.mxu0 0
    %949 = vmatpush1.bf16.msra.mxu0 0
    %950 = vmatprep.subr.bf16.mxu0 0
    %951 = vmatpush1.bf16.msra.mxu0 0
    %952 = vmatprep.subr.bf16.mxu0 0
    %953 = vmatpush1.bf16.msra.mxu0 0
    %954 = vmatprep.subr.bf16.mxu0 0
    %955 = vmatpush1.bf16.msra.mxu0 0
    %956 = vmatprep.subr.bf16.mxu0 0
    %957 = vmatpush1.bf16.msra.mxu0 0
    %958 = vmatprep.subr.bf16.mxu0 0
    %959 = vmatpush1.bf16.msra.mxu0 0
    %960 = vmatprep.subr.bf16.mxu0 0
    %961 = vmatpush1.bf16.msra.mxu0 0
    %962 = vmatprep.subr.bf16.mxu0 0
    %963 = vmatpush1.bf16.msra.mxu0 0
    %964 = vmatprep.subr.bf16.mxu0 0
    %965 = vmatpush1.bf16.msra.mxu0 0
    %966 = vmatprep.mubr.bf16.mxu0 0
    %967 = vmatmul.mubr.bf16.gmra.mrb[0].mxu0 %v846
    %v968 = vpop.f32.mrb[0].mxu0
    %v969 = vadd.f32 %v926, %v968
    %v970 = vpop.f32.mrb[0].mxu0
    %v971 = vadd.f32 %v928, %v970
    %v972 = vpop.f32.mrb[0].mxu0
    %v973 = vadd.f32 %v930, %v972
    %v974 = vpop.f32.mrb[0].mxu0
    %v975 = vadd.f32 %v932, %v974
    %976 = vdwg.mxu0
    %977 = vmatprep.subr.bf16.mxu0 0
    %978 = vmatpush1.bf16.msra.mxu0 %v630
    %979 = vmatprep.subr.bf16.mxu0 0
    %980 = vmatpush1.bf16.msra.mxu0 %v633
    %981 = vmatprep.subr.bf16.mxu0 0
    %982 = vmatpush1.bf16.msra.mxu0 %v636
    %983 = vmatprep.subr.bf16.mxu0 0
    %984 = vmatpush1.bf16.msra.mxu0 %v639
    %985 = vmatprep.subr.bf16.mxu0 0
    %986 = vmatpush1.bf16.msra.mxu0 %v642
    %987 = vmatprep.subr.bf16.mxu0 0
    %988 = vmatpush1.bf16.msra.mxu0 %v645
    %989 = vmatprep.subr.bf16.mxu0 0
    %990 = vmatpush1.bf16.msra.mxu0 %v648
    %991 = vmatprep.subr.bf16.mxu0 0
    %992 = vmatpush1.bf16.msra.mxu0 %v651
    %993 = vmatprep.subr.bf16.mxu0 0
    %994 = vmatpush1.bf16.msra.mxu0 %v654
    %995 = vmatprep.subr.bf16.mxu0 0
    %996 = vmatpush1.bf16.msra.mxu0 %v657
    %997 = vmatprep.subr.bf16.mxu0 0
    %998 = vmatpush1.bf16.msra.mxu0 %v660
    %999 = vmatprep.subr.bf16.mxu0 0
    %1000 = vmatpush1.bf16.msra.mxu0 %v663
    %1001 = vmatprep.subr.bf16.mxu0 0
    %1002 = vmatpush1.bf16.msra.mxu0 %v666
    %1003 = vmatprep.subr.bf16.mxu0 0
    %1004 = vmatpush1.bf16.msra.mxu0 %v669
    %1005 = vmatprep.subr.bf16.mxu0 0
    %1006 = vmatpush1.bf16.msra.mxu0 %v672
    %1007 = vmatprep.subr.bf16.mxu0 0
    %1008 = vmatpush1.bf16.msra.mxu0 %v675
    %1009 = vmatprep.mubr.bf16.mxu0 %v103
    %1010 = vmatmul.mubr.bf16.gmra.mrb[0].mxu0 %v102
    %v1011 = vpop.f32.mrb[0].mxu0
    %v1012 = vadd.f32 %v264, %v1011
    %v1013 = vpop.f32.mrb[0].mxu0
    %v1014 = vpop.f32.mrb[0].mxu0
    %v1015 = vadd.f32 %v264, %v1014
    %v1016 = vpop.f32.mrb[0].mxu0
    %1017 = vdwg.mxu0
    %1018 = vmatprep.subr.bf16.mxu0 0
    %1019 = vmatpush1.bf16.msra.mxu0 %v678
    %1020 = vmatprep.subr.bf16.mxu0 0
    %1021 = vmatpush1.bf16.msra.mxu0 %v681
    %1022 = vmatprep.subr.bf16.mxu0 0
    %1023 = vmatpush1.bf16.msra.mxu0 %v684
    %1024 = vmatprep.subr.bf16.mxu0 0
    %1025 = vmatpush1.bf16.msra.mxu0 %v687
    %1026 = vmatprep.subr.bf16.mxu0 0
    %1027 = vmatpush1.bf16.msra.mxu0 %v690
    %1028 = vmatprep.subr.bf16.mxu0 0
    %1029 = vmatpush1.bf16.msra.mxu0 %v693
    %1030 = vmatprep.subr.bf16.mxu0 0
    %1031 = vmatpush1.bf16.msra.mxu0 %v696
    %1032 = vmatprep.subr.bf16.mxu0 0
    %1033 = vmatpush1.bf16.msra.mxu0 %v699
    %1034 = vmatprep.subr.bf16.mxu0 0
    %1035 = vmatpush1.bf16.msra.mxu0 %v702
    %1036 = vmatprep.subr.bf16.mxu0 0
    %1037 = vmatpush1.bf16.msra.mxu0 %v705
    %1038 = vmatprep.subr.bf16.mxu0 0
    %1039 = vmatpush1.bf16.msra.mxu0 %v708
    %1040 = vmatprep.subr.bf16.mxu0 0
    %1041 = vmatpush1.bf16.msra.mxu0 %v711
    %1042 = vmatprep.subr.bf16.mxu0 0
    %1043 = vmatpush1.bf16.msra.mxu0 %v714
    %1044 = vmatprep.subr.bf16.mxu0 0
    %1045 = vmatpush1.bf16.msra.mxu0 %v717
    %1046 = vmatprep.subr.bf16.mxu0 0
    %1047 = vmatpush1.bf16.msra.mxu0 %v720
    %1048 = vmatprep.subr.bf16.mxu0 0
    %1049 = vmatpush1.bf16.msra.mxu0 %v723
    %1050 = vmatprep.mubr.bf16.mxu0 %v105
    %1051 = vmatmul.mubr.bf16.gmra.mrb[0].mxu0 %v104
    %v1052 = vpop.f32.mrb[0].mxu0
    %v1053 = vadd.f32 %v1012, %v1052
    %v1054 = vpop.f32.mrb[0].mxu0
    %v1055 = vpop.f32.mrb[0].mxu0
    %v1056 = vadd.f32 %v1015, %v1055
    %v1057 = vpop.f32.mrb[0].mxu0
    %1058 = vdwg.mxu0
    %1059 = vmatprep.subr.bf16.mxu0 0
    %1060 = vmatpush1.bf16.msra.mxu0 %v726
    %1061 = vmatprep.subr.bf16.mxu0 0
    %1062 = vmatpush1.bf16.msra.mxu0 %v729
    %1063 = vmatprep.subr.bf16.mxu0 0
    %1064 = vmatpush1.bf16.msra.mxu0 %v732
    %1065 = vmatprep.subr.bf16.mxu0 0
    %1066 = vmatpush1.bf16.msra.mxu0 %v735
    %1067 = vmatprep.subr.bf16.mxu0 0
    %1068 = vmatpush1.bf16.msra.mxu0 0
    %1069 = vmatprep.subr.bf16.mxu0 0
    %1070 = vmatpush1.bf16.msra.mxu0 0
    %1071 = vmatprep.subr.bf16.mxu0 0
    %1072 = vmatpush1.bf16.msra.mxu0 0
    %1073 = vmatprep.subr.bf16.mxu0 0
    %1074 = vmatpush1.bf16.msra.mxu0 0
    %1075 = vmatprep.subr.bf16.mxu0 0
    %1076 = vmatpush1.bf16.msra.mxu0 0
    %1077 = vmatprep.subr.bf16.mxu0 0
    %1078 = vmatpush1.bf16.msra.mxu0 0
    %1079 = vmatprep.subr.bf16.mxu0 0
    %1080 = vmatpush1.bf16.msra.mxu0 0
    %1081 = vmatprep.subr.bf16.mxu0 0
    %1082 = vmatpush1.bf16.msra.mxu0 0
    %1083 = vmatprep.subr.bf16.mxu0 0
    %1084 = vmatpush1.bf16.msra.mxu0 0
    %1085 = vmatprep.subr.bf16.mxu0 0
    %1086 = vmatpush1.bf16.msra.mxu0 0
    %1087 = vmatprep.subr.bf16.mxu0 0
    %1088 = vmatpush1.bf16.msra.mxu0 0
    %1089 = vmatprep.subr.bf16.mxu0 0
    %1090 = vmatpush1.bf16.msra.mxu0 0
    %1091 = vmatprep.mubr.bf16.mxu0 0
    %1092 = vmatmul.mubr.bf16.gmra.mrb[0].mxu0 %v846
    %v1093 = vpop.f32.mrb[0].mxu0
    %v1094 = vadd.f32 %v1053, %v1093
    %v1095 = vpop.f32.mrb[0].mxu0
    %v1096 = vpop.f32.mrb[0].mxu0
    %v1097 = vadd.f32 %v1056, %v1096
    %v1098 = vpop.f32.mrb[0].mxu0
    %1099 = vdwg.mxu0
    %v1100 = vmul.f32 %v969, 0.5
    %v1101 = vmul.f32 %v971, 0.5
    %v1102 = vmul.f32 %v1094, 0.5
    %v1103 = vmul.f32 %v973, 0.5
    %v1104 = vmul.f32 %v975, 0.5
    %v1105 = vmul.f32 %v1097, 0.5
    %v1106 = vmul.f32 %v969, 0.70710677
    %v1107 = vmul.f32 %v971, 0.70710677
    %v1108 = vmul.f32 %v1094, 0.70710677
    %v1109 = vmul.f32 %v973, 0.70710677
    %v1110 = vmul.f32 %v975, 0.70710677
    %v1111 = vmul.f32 %v1097, 0.70710677
    %v1112 = vand.u32 2147483647, %v1106
    %v1113 = vand.u32 2147483647, %v1107
    %v1114 = vand.u32 2147483647, %v1108
    %v1115 = vand.u32 2147483647, %v1109
    %v1116 = vand.u32 2147483647, %v1110
    %v1117 = vand.u32 2147483647, %v1111
    %v1118 = vmul.f32 %v1112, 0.3275911
    %v1119 = vmul.f32 %v1113, 0.3275911
    %v1120 = vmul.f32 %v1114, 0.3275911
    %v1121 = vmul.f32 %v1115, 0.3275911
    %v1122 = vmul.f32 %v1116, 0.3275911
    %v1123 = vmul.f32 %v1117, 0.3275911
    %v1124 = vadd.f32 %v1118, 1.0
    %v1125 = vadd.f32 %v1119, 1.0
    %v1126 = vadd.f32 %v1120, 1.0
    %v1127 = vadd.f32 %v1121, 1.0
    %v1128 = vadd.f32 %v1122, 1.0
    %v1129 = vadd.f32 %v1123, 1.0
    %v1130 = vrcp.pop %v1124
    %v1131 = vrcp.pop %v1125
    %v1132 = vrcp.pop %v1126
    %v1133 = vrcp.pop %v1127
    %v1134 = vrcp.pop %v1128
    %v1135 = vrcp.pop %v1129
    %v1136 = vmul.f32 %v1130, 1.0614054
    %v1137 = vmul.f32 %v1131, 1.0614054
    %v1138 = vmul.f32 %v1132, 1.0614054
    %v1139 = vmul.f32 %v1133, 1.0614054
    %v1140 = vmul.f32 %v1134, 1.0614054
    %v1141 = vmul.f32 %v1135, 1.0614054
    %v1142 = vadd.f32 %v1136, -1.4531521
    %v1143 = vadd.f32 %v1137, -1.4531521
    %v1144 = vadd.f32 %v1138, -1.4531521
    %v1145 = vadd.f32 %v1139, -1.4531521
    %v1146 = vadd.f32 %v1140, -1.4531521
    %v1147 = vadd.f32 %v1141, -1.4531521
    %v1148 = vmul.f32 %v1130, %v1142
    %v1149 = vmul.f32 %v1131, %v1143
    %v1150 = vmul.f32 %v1132, %v1144
    %v1151 = vmul.f32 %v1133, %v1145
    %v1152 = vmul.f32 %v1134, %v1146
    %v1153 = vmul.f32 %v1135, %v1147
    %v1154 = vadd.f32 %v1148, 1.4214138
    %v1155 = vadd.f32 %v1149, 1.4214138
    %v1156 = vadd.f32 %v1150, 1.4214138
    %v1157 = vadd.f32 %v1151, 1.4214138
    %v1158 = vadd.f32 %v1152, 1.4214138
    %v1159 = vadd.f32 %v1153, 1.4214138
    %v1160 = vmul.f32 %v1130, %v1154
    %v1161 = vmul.f32 %v1131, %v1155
    %v1162 = vmul.f32 %v1132, %v1156
    %v1163 = vmul.f32 %v1133, %v1157
    %v1164 = vmul.f32 %v1134, %v1158
    %v1165 = vmul.f32 %v1135, %v1159
    %v1166 = vadd.f32 %v1160, -0.28449672
    %v1167 = vadd.f32 %v1161, -0.28449672
    %v1168 = vadd.f32 %v1162, -0.28449672
    %v1169 = vadd.f32 %v1163, -0.28449672
    %v1170 = vadd.f32 %v1164, -0.28449672
    %v1171 = vadd.f32 %v1165, -0.28449672
    %v1172 = vmul.f32 %v1130, %v1166
    %v1173 = vmul.f32 %v1131, %v1167
    %v1174 = vmul.f32 %v1132, %v1168
    %v1175 = vmul.f32 %v1133, %v1169
    %v1176 = vmul.f32 %v1134, %v1170
    %v1177 = vmul.f32 %v1135, %v1171
    %v1178 = vadd.f32 %v1172, 0.2548296
    %v1179 = vadd.f32 %v1173, 0.2548296
    %v1180 = vadd.f32 %v1174, 0.2548296
    %v1181 = vadd.f32 %v1175, 0.2548296
    %v1182 = vadd.f32 %v1176, 0.2548296
    %v1183 = vadd.f32 %v1177, 0.2548296
    %v1184 = vmul.f32 %v1130, %v1178
    %v1185 = vmul.f32 %v1131, %v1179
    %v1186 = vmul.f32 %v1132, %v1180
    %v1187 = vmul.f32 %v1133, %v1181
    %v1188 = vmul.f32 %v1134, %v1182
    %v1189 = vmul.f32 %v1135, %v1183
    %v1190 = vsub.f32 0.0, %v1112
    %v1191 = vsub.f32 0.0, %v1113
    %v1192 = vsub.f32 0.0, %v1114
    %v1193 = vsub.f32 0.0, %v1115
    %v1194 = vsub.f32 0.0, %v1116
    %v1195 = vsub.f32 0.0, %v1117
    %v1196 = vmul.f32 %v1190, %v1112
    %v1197 = vmul.f32 %v1191, %v1113
    %v1198 = vmul.f32 %v1192, %v1114
    %v1199 = vmul.f32 %v1193, %v1115
    %v1200 = vmul.f32 %v1194, %v1116
    %v1201 = vmul.f32 %v1195, %v1117
    %v1202 = vmul.f32 %v1196, 1.442695
    %v1203 = vpow.pop %v1202
    %v1204 = vmul.f32 %v1197, 1.442695
    %v1205 = vpow.pop %v1204
    %v1206 = vmul.f32 %v1198, 1.442695
    %v1207 = vpow.pop %v1206
    %v1208 = vmul.f32 %v1199, 1.442695
    %v1209 = vpow.pop %v1208
    %v1210 = vmul.f32 %v1200, 1.442695
    %v1211 = vpow.pop %v1210
    %v1212 = vmul.f32 %v1201, 1.442695
    %v1213 = vpow.pop %v1212
    %v1214 = vmul.f32 %v1184, %v1203
    %v1215 = vmul.f32 %v1185, %v1205
    %v1216 = vmul.f32 %v1186, %v1207
    %v1217 = vmul.f32 %v1187, %v1209
    %v1218 = vmul.f32 %v1188, %v1211
    %v1219 = vmul.f32 %v1189, %v1213
    %v1220 = vsub.f32 1.0, %v1214
    %v1221 = vsub.f32 1.0, %v1215
    %v1222 = vsub.f32 1.0, %v1216
    %v1223 = vsub.f32 1.0, %v1217
    %v1224 = vsub.f32 1.0, %v1218
    %v1225 = vsub.f32 1.0, %v1219
    %vm1226 = vcmp.ge.f32.partialorder %v1106, 0.0
    %vm1227 = vcmp.ge.f32.partialorder %v1107, 0.0
    %vm1228 = vcmp.ge.f32.partialorder %v1108, 0.0
    %vm1229 = vcmp.ge.f32.partialorder %v1109, 0.0
    %vm1230 = vcmp.ge.f32.partialorder %v1110, 0.0
    %vm1231 = vcmp.ge.f32.partialorder %v1111, 0.0
    %v1232 = vsub.f32 0.0, %v1220
    %v1233 = vsub.f32 0.0, %v1221
    %v1234 = vsub.f32 0.0, %v1222
    %v1235 = vsub.f32 0.0, %v1223
    %v1236 = vsub.f32 0.0, %v1224
    %v1237 = vsub.f32 0.0, %v1225
    %v1238 = vsel %vm1226, %v1220, %v1232
    %v1239 = vsel %vm1227, %v1221, %v1233
    %v1240 = vsel %vm1228, %v1222, %v1234
    %v1241 = vsel %vm1229, %v1223, %v1235
    %v1242 = vsel %vm1230, %v1224, %v1236
    %v1243 = vsel %vm1231, %v1225, %v1237
    %v1244 = vadd.f32 %v1238, 1.0
    %v1245 = vadd.f32 %v1239, 1.0
    %v1246 = vadd.f32 %v1240, 1.0
    %v1247 = vadd.f32 %v1241, 1.0
    %v1248 = vadd.f32 %v1242, 1.0
    %v1249 = vadd.f32 %v1243, 1.0
    %v1250 = vmul.f32 %v1100, %v1244
    %v1251 = vmul.f32 %v1101, %v1245
    %v1252 = vmul.f32 %v1102, %v1246
    %v1253 = vmul.f32 %v1103, %v1247
    %v1254 = vmul.f32 %v1104, %v1248
    %v1255 = vmul.f32 %v1105, %v1249
    %v1262 = vrot.slane %v1250, 1
    %v1263 = vrot.slane %v1253, 1
    %v1264 = vsel %vm67, %v1262, %v1263
    %v1265 = vrot.slane %v1251, 1
    %v1266 = vrot.slane %v1254, 1
    %v1267 = vsel %vm67, %v1265, %v1266
    %v1268 = vrot.slane %v1252, 1
    %v1269 = vrot.slane %v1255, 1
    %v1270 = vsel %vm67, %v1268, %v1269
    %vm1274 = vcmask 1045504
    %v1275 = vrot.slane %v1250, 2
    %v1276 = vrot.slane %v1253, 2
    %v1277 = vsel %vm1274, %v1275, %v1276
    %v1278 = vrot.slane %v1251, 2
    %v1279 = vrot.slane %v1254, 2
    %v1280 = vsel %vm1274, %v1278, %v1279
    %v1281 = vrot.slane %v1252, 2
    %v1282 = vrot.slane %v1255, 2
    %v1283 = vsel %vm1274, %v1281, %v1282
    %v1287 = vpack.c.bf16 %v1250, %v1250
    %v1288 = vpack.c.bf16 %v1251, %v1251
    %v1289 = vpack.c.bf16 %v1252, %v1252
    %v1290 = vpack.c.bf16 %v1264, %v1264
    %v1291 = vpack.c.bf16 %v1267, %v1267
    %v1292 = vpack.c.bf16 %v1270, %v1270
    %v1293 = vpack.c.bf16 %v1277, %v1277
    %v1294 = vpack.c.bf16 %v1280, %v1280
    %v1295 = vpack.c.bf16 %v1283, %v1283
    %v1296 = vld [vmem:[%s3] sm:$0xf]
    %v1297 = vld [vmem:[%s3 + $0x4] sm:$0xf]
    %v1298 = vld [vmem:[%s3 + $0x8] sm:$0xf]
    %v1299 = vld [vmem:[%s3 + $0xc] sm:$0xf]
    %v1300 = vld [vmem:[%s3 + $0x10] sm:$0xf]
    %v1301 = vld [vmem:[%s3 + $0x14] sm:$0xf]
    %v1302 = vld [vmem:[%s3 + $0x18] sm:$0xf]
    %v1303 = vld [vmem:[%s3 + $0x1c] sm:$0xf]
    %v1304 = vld [vmem:[%s3 + $0x20] sm:$0xf]
    %v1305 = vld [vmem:[%s3 + $0x24] sm:$0xf]
    %v1306 = vld [vmem:[%s3 + $0x28] sm:$0xf]
    %v1307 = vld [vmem:[%s3 + $0x2c] sm:$0xf]
    %v1308 = vld [vmem:[%s3 + $0x30] sm:$0xf]
    %v1309 = vld [vmem:[%s3 + $0x34] sm:$0xf]
    %v1310 = vld [vmem:[%s3 + $0x38] sm:$0xf]
    %v1311 = vld [vmem:[%s3 + $0x3c] sm:$0xf]
    %v1312 = vld [vmem:[%s3 + $0x40] sm:$0xf]
    %v1313 = vld [vmem:[%s3 + $0x44] sm:$0xf]
    %v1314 = vld [vmem:[%s3 + $0x48] sm:$0xf]
    %v1315 = vld [vmem:[%s3 + $0x4c] sm:$0xf]
    %v1316 = vld [vmem:[%s3 + $0x50] sm:$0xf]
    %v1317 = vld [vmem:[%s3 + $0x54] sm:$0xf]
    %v1318 = vld [vmem:[%s3 + $0x58] sm:$0xf]
    %v1319 = vld [vmem:[%s3 + $0x5c] sm:$0xf]
    %v1320 = vld [vmem:[%s3 + $0x60] sm:$0xf]
    %v1321 = vld [vmem:[%s3 + $0x64] sm:$0xf]
    %v1322 = vld [vmem:[%s3 + $0x68] sm:$0xf]
    %v1323 = vld [vmem:[%s3 + $0x6c] sm:$0xf]
    %v1324 = vld [vmem:[%s3 + $0x70] sm:$0xf]
    %v1325 = vld [vmem:[%s3 + $0x74] sm:$0xf]
    %v1326 = vld [vmem:[%s3 + $0x78] sm:$0xf]
    %v1327 = vld [vmem:[%s3 + $0x7c] sm:$0xf]
    %v1328 = vld [vmem:[%s3 + $0x80] sm:$0xf]
    %v1329 = vld [vmem:[%s3 + $0x84] sm:$0xf]
    %v1330 = vld [vmem:[%s3 + $0x88] sm:$0xf]
    %v1331 = vld [vmem:[%s3 + $0x8c] sm:$0xf]
    %v1332 = vld [vmem:[%s3 + $0x90] sm:$0xf]
    %v1333 = vld [vmem:[%s3 + $0x94] sm:$0xf]
    %v1334 = vld [vmem:[%s3 + $0x98] sm:$0xf]
    %v1335 = vld [vmem:[%s3 + $0x9c] sm:$0xf]
    %v1336 = vld [vmem:[%s3 + $0xa0] sm:$0xf]
    %v1337 = vld [vmem:[%s3 + $0xa4] sm:$0xf]
    %v1338 = vld [vmem:[%s3 + $0xa8] sm:$0xf]
    %v1339 = vld [vmem:[%s3 + $0xac] sm:$0xf]
    %v1340 = vld [vmem:[%s3 + $0xb0] sm:$0xf]
    %v1341 = vld [vmem:[%s3 + $0xb4] sm:$0xf]
    %v1342 = vld [vmem:[%s3 + $0xb8] sm:$0xf]
    %v1343 = vld [vmem:[%s3 + $0xbc] sm:$0xf]
    %v1344 = vld [vmem:[%s3 + $0xc0] sm:$0xf]
    %v1345 = vld [vmem:[%s3 + $0xc4] sm:$0xf]
    %v1346 = vld [vmem:[%s3 + $0xc8] sm:$0xf]
    %v1347 = vld [vmem:[%s3 + $0xcc] sm:$0xf]
    %v1348 = vld [vmem:[%s3 + $0xd0] sm:$0xf]
    %v1349 = vld [vmem:[%s3 + $0xd4] sm:$0xf]
    %v1350 = vld [vmem:[%s3 + $0xd8] sm:$0xf]
    %v1351 = vld [vmem:[%s3 + $0xdc] sm:$0xf]
    %v1352 = vld [vmem:[%s3 + $0xe0] sm:$0xf]
    %v1353 = vld [vmem:[%s3 + $0xe4] sm:$0xf]
    %v1354 = vld [vmem:[%s3 + $0xe8] sm:$0xf]
    %v1355 = vld [vmem:[%s3 + $0xec] sm:$0xf]
    %v1356 = vld [vmem:[%s3 + $0xf0] sm:$0xf]
    %v1357 = vld [vmem:[%s3 + $0xf4] sm:$0xf]
    %v1358 = vld [vmem:[%s3 + $0xf8] sm:$0xf]
    %v1359 = vld [vmem:[%s3 + $0xfc] sm:$0xf]
    %v1360 = vld [vmem:[%s3 + $0x100] sm:$0xf]
    %v1361 = vld [vmem:[%s3 + $0x104] sm:$0xf]
    %v1362 = vld [vmem:[%s3 + $0x108] sm:$0xf]
    %v1363 = vld [vmem:[%s3 + $0x10c] sm:$0xf]
    %v1364 = vld [vmem:[%s3 + $0x110] sm:$0xf]
    %v1365 = vld [vmem:[%s3 + $0x114] sm:$0xf]
    %v1366 = vld [vmem:[%s3 + $0x118] sm:$0xf]
    %v1367 = vld [vmem:[%s3 + $0x11c] sm:$0xf]
    %v1368 = vld [vmem:[%s3 + $0x120] sm:$0xf]
    %v1369 = vld [vmem:[%s3 + $0x124] sm:$0xf]
    %v1370 = vld [vmem:[%s3 + $0x128] sm:$0xf]
    %v1371 = vld [vmem:[%s3 + $0x12c] sm:$0xf]
    %v1372 = vld [vmem:[%s3 + $0x130] sm:$0xf]
    %v1373 = vld [vmem:[%s3 + $0x134] sm:$0xf]
    %v1374 = vld [vmem:[%s3 + $0x138] sm:$0xf]
    %v1375 = vld [vmem:[%s3 + $0x13c] sm:$0xf]
    %v1376 = vld [vmem:[%s3 + $0x140] sm:$0xf]
    %v1377 = vld [vmem:[%s3 + $0x144] sm:$0xf]
    %v1378 = vld [vmem:[%s3 + $0x148] sm:$0xf]
    %v1379 = vld [vmem:[%s3 + $0x14c] sm:$0xf]
    %v1380 = vld [vmem:[%s3 + $0x150] sm:$0xf]
    %v1381 = vld [vmem:[%s3 + $0x154] sm:$0xf]
    %v1382 = vld [vmem:[%s3 + $0x158] sm:$0xf]
    %v1383 = vld [vmem:[%s3 + $0x15c] sm:$0xf]
    %v1384 = vld [vmem:[%s3 + $0x160] sm:$0xf]
    %v1385 = vld [vmem:[%s3 + $0x164] sm:$0xf]
    %v1386 = vld [vmem:[%s3 + $0x168] sm:$0xf]
    %v1387 = vld [vmem:[%s3 + $0x16c] sm:$0xf]
    %v1388 = vld [vmem:[%s3 + $0x170] sm:$0xf]
    %v1389 = vld [vmem:[%s3 + $0x174] sm:$0xf]
    %v1390 = vld [vmem:[%s3 + $0x178] sm:$0xf]
    %v1391 = vld [vmem:[%s3 + $0x17c] sm:$0xf]
    %v1392 = vld [vmem:[%s3 + $0x180] sm:$0xf]
    %v1393 = vld [vmem:[%s3 + $0x184] sm:$0xf]
    %v1394 = vld [vmem:[%s3 + $0x188] sm:$0xf]
    %v1395 = vld [vmem:[%s3 + $0x18c] sm:$0xf]
    %v1396 = vld [vmem:[%s3 + $0x190] sm:$0xf]
    %v1397 = vld [vmem:[%s3 + $0x194] sm:$0xf]
    %v1398 = vld [vmem:[%s3 + $0x198] sm:$0xf]
    %v1399 = vld [vmem:[%s3 + $0x19c] sm:$0xf]
    %v1400 = vld [vmem:[%s3 + $0x1a0] sm:$0xf]
    %v1401 = vld [vmem:[%s3 + $0x1a4] sm:$0xf]
    %v1402 = vld [vmem:[%s3 + $0x1a8] sm:$0xf]
    %v1403 = vld [vmem:[%s3 + $0x1ac] sm:$0xf]
    %v1404 = vld [vmem:[%s3 + $0x1b0] sm:$0xf]
    %v1405 = vld [vmem:[%s3 + $0x1b4] sm:$0xf]
    %v1406 = vld [vmem:[%s3 + $0x1b8] sm:$0xf]
    %v1407 = vld [vmem:[%s3 + $0x1bc] sm:$0xf]
    %v1408 = vld [vmem:[%s3 + $0x1c0] sm:$0xf]
    %v1409 = vld [vmem:[%s3 + $0x1c4] sm:$0xf]
    %v1410 = vld [vmem:[%s3 + $0x1c8] sm:$0xf]
    %v1411 = vld [vmem:[%s3 + $0x1cc] sm:$0xf]
    %v1412 = vld [vmem:[%s3 + $0x1d0] sm:$0xf]
    %v1413 = vld [vmem:[%s3 + $0x1d4] sm:$0xf]
    %v1414 = vld [vmem:[%s3 + $0x1d8] sm:$0xf]
    %v1415 = vld [vmem:[%s3 + $0x1dc] sm:$0xf]
    %v1416 = vld [vmem:[%s3 + $0x1e0] sm:$0xf]
    %v1417 = vld [vmem:[%s3 + $0x1e4] sm:$0xf]
    %v1418 = vld [vmem:[%s3 + $0x1e8] sm:$0xf]
    %v1419 = vld [vmem:[%s3 + $0x1ec] sm:$0xf]
    %v1420 = vld [vmem:[%s3 + $0x1f0] sm:$0xf]
    %v1421 = vld [vmem:[%s3 + $0x1f4] sm:$0xf]
    %v1422 = vld [vmem:[%s3 + $0x1f8] sm:$0xf]
    %v1423 = vld [vmem:[%s3 + $0x1fc] sm:$0xf]
    %v1424 = vld [vmem:[%s3 + $0x200] sm:$0xf]
    %v1425 = vld [vmem:[%s3 + $0x204] sm:$0xf]
    %v1426 = vld [vmem:[%s3 + $0x208] sm:$0xf]
    %v1427 = vld [vmem:[%s3 + $0x20c] sm:$0xf]
    %v1428 = vld [vmem:[%s3 + $0x210] sm:$0xf]
    %v1429 = vld [vmem:[%s3 + $0x214] sm:$0xf]
    %v1430 = vld [vmem:[%s3 + $0x218] sm:$0xf]
    %v1431 = vld [vmem:[%s3 + $0x21c] sm:$0xf]
    %v1432 = vld [vmem:[%s3 + $0x220] sm:$0xf]
    %v1433 = vld [vmem:[%s3 + $0x224] sm:$0xf]
    %v1434 = vld [vmem:[%s3 + $0x228] sm:$0xf]
    %v1435 = vld [vmem:[%s3 + $0x22c] sm:$0xf]
    %v1436 = vld [vmem:[%s3 + $0x230] sm:$0xf]
    %v1437 = vld [vmem:[%s3 + $0x234] sm:$0xf]
    %v1438 = vld [vmem:[%s3 + $0x238] sm:$0xf]
    %v1439 = vld [vmem:[%s3 + $0x23c] sm:$0xf]
    %v1440 = vld [vmem:[%s4] sm:$0x1]
    %v1442 = vlaneseq
    %v1443 = vshrl.u32 %v1442, 7
    %v1444 = vsub.s32 0, %v1443
    %v1445 = vrot.slane %v1440, %v1444
    %v1591 = vunpack.c.l.b16 %v1296
    %v1592 = vunpack.c.l.b16 %v1297
    %v1593 = vunpack.c.l.b16 %v1298
    %v1594 = vunpack.c.l.b16 %v1299
    %v1595 = vunpack.c.l.b16 %v1300
    %v1596 = vunpack.c.l.b16 %v1301
    %v1597 = vunpack.c.l.b16 %v1302
    %v1598 = vunpack.c.l.b16 %v1303
    %v1599 = vunpack.c.l.b16 %v1304
    %v1600 = vunpack.c.l.b16 %v1305
    %v1601 = vunpack.c.l.b16 %v1306
    %v1602 = vunpack.c.l.b16 %v1307
    %v1603 = vunpack.c.l.b16 %v1308
    %v1604 = vunpack.c.l.b16 %v1309
    %v1605 = vunpack.c.l.b16 %v1310
    %v1606 = vunpack.c.l.b16 %v1311
    %v1607 = vunpack.c.l.b16 %v1312
    %v1608 = vunpack.c.l.b16 %v1313
    %v1609 = vunpack.c.l.b16 %v1314
    %v1610 = vunpack.c.l.b16 %v1315
    %v1611 = vunpack.c.l.b16 %v1316
    %v1612 = vunpack.c.l.b16 %v1317
    %v1613 = vunpack.c.l.b16 %v1318
    %v1614 = vunpack.c.l.b16 %v1319
    %v1615 = vunpack.c.l.b16 %v1320
    %v1616 = vunpack.c.l.b16 %v1321
    %v1617 = vunpack.c.l.b16 %v1322
    %v1618 = vunpack.c.l.b16 %v1323
    %v1619 = vunpack.c.l.b16 %v1324
    %v1620 = vunpack.c.l.b16 %v1325
    %v1621 = vunpack.c.l.b16 %v1326
    %v1622 = vunpack.c.l.b16 %v1327
    %v1623 = vunpack.c.l.b16 %v1328
    %v1624 = vunpack.c.l.b16 %v1329
    %v1625 = vunpack.c.l.b16 %v1330
    %v1626 = vunpack.c.l.b16 %v1331
    %v1627 = vunpack.c.l.b16 %v1332
    %v1628 = vunpack.c.l.b16 %v1333
    %v1629 = vunpack.c.l.b16 %v1334
    %v1630 = vunpack.c.l.b16 %v1335
    %v1631 = vunpack.c.l.b16 %v1336
    %v1632 = vunpack.c.l.b16 %v1337
    %v1633 = vunpack.c.l.b16 %v1338
    %v1634 = vunpack.c.l.b16 %v1339
    %v1635 = vunpack.c.l.b16 %v1340
    %v1636 = vunpack.c.l.b16 %v1341
    %v1637 = vunpack.c.l.b16 %v1342
    %v1638 = vunpack.c.l.b16 %v1343
    %v1639 = vunpack.c.l.b16 %v1344
    %v1640 = vunpack.c.l.b16 %v1345
    %v1641 = vunpack.c.l.b16 %v1346
    %v1642 = vunpack.c.l.b16 %v1347
    %v1643 = vunpack.c.l.b16 %v1348
    %v1644 = vunpack.c.l.b16 %v1349
    %v1645 = vunpack.c.l.b16 %v1350
    %v1646 = vunpack.c.l.b16 %v1351
    %v1647 = vunpack.c.l.b16 %v1352
    %v1648 = vunpack.c.l.b16 %v1353
    %v1649 = vunpack.c.l.b16 %v1354
    %v1650 = vunpack.c.l.b16 %v1355
    %v1651 = vunpack.c.l.b16 %v1356
    %v1652 = vunpack.c.l.b16 %v1357
    %v1653 = vunpack.c.l.b16 %v1358
    %v1654 = vunpack.c.l.b16 %v1359
    %v1655 = vunpack.c.l.b16 %v1360
    %v1656 = vunpack.c.l.b16 %v1361
    %v1657 = vunpack.c.l.b16 %v1362
    %v1658 = vunpack.c.l.b16 %v1363
    %v1659 = vunpack.c.l.b16 %v1364
    %v1660 = vunpack.c.l.b16 %v1365
    %v1661 = vunpack.c.l.b16 %v1366
    %v1662 = vunpack.c.l.b16 %v1367
    %v1663 = vunpack.c.l.b16 %v1368
    %v1664 = vunpack.c.l.b16 %v1369
    %v1665 = vunpack.c.l.b16 %v1370
    %v1666 = vunpack.c.l.b16 %v1371
    %v1667 = vunpack.c.l.b16 %v1372
    %v1668 = vunpack.c.l.b16 %v1373
    %v1669 = vunpack.c.l.b16 %v1374
    %v1670 = vunpack.c.l.b16 %v1375
    %v1671 = vunpack.c.l.b16 %v1376
    %v1672 = vunpack.c.l.b16 %v1377
    %v1673 = vunpack.c.l.b16 %v1378
    %v1674 = vunpack.c.l.b16 %v1379
    %v1675 = vunpack.c.l.b16 %v1380
    %v1676 = vunpack.c.l.b16 %v1381
    %v1677 = vunpack.c.l.b16 %v1382
    %v1678 = vunpack.c.l.b16 %v1383
    %v1679 = vunpack.c.l.b16 %v1384
    %v1680 = vunpack.c.l.b16 %v1385
    %v1681 = vunpack.c.l.b16 %v1386
    %v1682 = vunpack.c.l.b16 %v1387
    %v1683 = vunpack.c.l.b16 %v1388
    %v1684 = vunpack.c.l.b16 %v1389
    %v1685 = vunpack.c.l.b16 %v1390
    %v1686 = vunpack.c.l.b16 %v1391
    %v1687 = vunpack.c.l.b16 %v1392
    %v1688 = vunpack.c.l.b16 %v1393
    %v1689 = vunpack.c.l.b16 %v1394
    %v1690 = vunpack.c.l.b16 %v1395
    %v1691 = vunpack.c.l.b16 %v1396
    %v1692 = vunpack.c.l.b16 %v1397
    %v1693 = vunpack.c.l.b16 %v1398
    %v1694 = vunpack.c.l.b16 %v1399
    %v1695 = vunpack.c.l.b16 %v1400
    %v1696 = vunpack.c.l.b16 %v1401
    %v1697 = vunpack.c.l.b16 %v1402
    %v1698 = vunpack.c.l.b16 %v1403
    %v1699 = vunpack.c.l.b16 %v1404
    %v1700 = vunpack.c.l.b16 %v1405
    %v1701 = vunpack.c.l.b16 %v1406
    %v1702 = vunpack.c.l.b16 %v1407
    %v1703 = vunpack.c.l.b16 %v1408
    %v1704 = vunpack.c.l.b16 %v1409
    %v1705 = vunpack.c.l.b16 %v1410
    %v1706 = vunpack.c.l.b16 %v1411
    %v1707 = vunpack.c.l.b16 %v1412
    %v1708 = vunpack.c.l.b16 %v1413
    %v1709 = vunpack.c.l.b16 %v1414
    %v1710 = vunpack.c.l.b16 %v1415
    %v1711 = vunpack.c.l.b16 %v1416
    %v1712 = vunpack.c.l.b16 %v1417
    %v1713 = vunpack.c.l.b16 %v1418
    %v1714 = vunpack.c.l.b16 %v1419
    %v1715 = vunpack.c.l.b16 %v1420
    %v1716 = vunpack.c.l.b16 %v1421
    %v1717 = vunpack.c.l.b16 %v1422
    %v1718 = vunpack.c.l.b16 %v1423
    %v1719 = vunpack.c.l.b16 %v1424
    %v1720 = vunpack.c.l.b16 %v1425
    %v1721 = vunpack.c.l.b16 %v1426
    %v1722 = vunpack.c.l.b16 %v1427
    %v1723 = vunpack.c.l.b16 %v1428
    %v1724 = vunpack.c.l.b16 %v1429
    %v1725 = vunpack.c.l.b16 %v1430
    %v1726 = vunpack.c.l.b16 %v1431
    %v1727 = vunpack.c.l.b16 %v1432
    %v1728 = vunpack.c.l.b16 %v1433
    %v1729 = vunpack.c.l.b16 %v1434
    %v1730 = vunpack.c.l.b16 %v1435
    %v1731 = vunpack.c.l.b16 %v1436
    %v1732 = vunpack.c.l.b16 %v1437
    %v1733 = vunpack.c.l.b16 %v1438
    %v1734 = vunpack.c.l.b16 %v1439
    %v1735 = vpack.c.b16 %v1592, %v1591
    %v1736 = vpack.c.b16 %v1594, %v1593
    %v1737 = vpack.c.b16 %v1596, %v1595
    %v1738 = vpack.c.b16 %v1598, %v1597
    %v1739 = vpack.c.b16 %v1600, %v1599
    %v1740 = vpack.c.b16 %v1602, %v1601
    %v1741 = vpack.c.b16 %v1604, %v1603
    %v1742 = vpack.c.b16 %v1606, %v1605
    %v1743 = vpack.c.b16 %v1608, %v1607
    %v1744 = vpack.c.b16 %v1610, %v1609
    %v1745 = vpack.c.b16 %v1612, %v1611
    %v1746 = vpack.c.b16 %v1614, %v1613
    %v1747 = vpack.c.b16 %v1616, %v1615
    %v1748 = vpack.c.b16 %v1618, %v1617
    %v1749 = vpack.c.b16 %v1620, %v1619
    %v1750 = vpack.c.b16 %v1622, %v1621
    %v1751 = vpack.c.b16 %v1624, %v1623
    %v1752 = vpack.c.b16 %v1626, %v1625
    %v1753 = vpack.c.b16 %v1628, %v1627
    %v1754 = vpack.c.b16 %v1630, %v1629
    %v1755 = vpack.c.b16 %v1632, %v1631
    %v1756 = vpack.c.b16 %v1634, %v1633
    %v1757 = vpack.c.b16 %v1636, %v1635
    %v1758 = vpack.c.b16 %v1638, %v1637
    %v1759 = vpack.c.b16 %v1640, %v1639
    %v1760 = vpack.c.b16 %v1642, %v1641
    %v1761 = vpack.c.b16 %v1644, %v1643
    %v1762 = vpack.c.b16 %v1646, %v1645
    %v1763 = vpack.c.b16 %v1648, %v1647
    %v1764 = vpack.c.b16 %v1650, %v1649
    %v1765 = vpack.c.b16 %v1652, %v1651
    %v1766 = vpack.c.b16 %v1654, %v1653
    %v1767 = vpack.c.b16 %v1656, %v1655
    %v1768 = vpack.c.b16 %v1658, %v1657
    %v1769 = vpack.c.b16 %v1660, %v1659
    %v1770 = vpack.c.b16 %v1662, %v1661
    %v1771 = vpack.c.b16 %v1664, %v1663
    %v1772 = vpack.c.b16 %v1666, %v1665
    %v1773 = vpack.c.b16 %v1668, %v1667
    %v1774 = vpack.c.b16 %v1670, %v1669
    %v1775 = vpack.c.b16 %v1672, %v1671
    %v1776 = vpack.c.b16 %v1674, %v1673
    %v1777 = vpack.c.b16 %v1676, %v1675
    %v1778 = vpack.c.b16 %v1678, %v1677
    %v1779 = vpack.c.b16 %v1680, %v1679
    %v1780 = vpack.c.b16 %v1682, %v1681
    %v1781 = vpack.c.b16 %v1684, %v1683
    %v1782 = vpack.c.b16 %v1686, %v1685
    %v1783 = vpack.c.b16 %v1688, %v1687
    %v1784 = vpack.c.b16 %v1690, %v1689
    %v1785 = vpack.c.b16 %v1692, %v1691
    %v1786 = vpack.c.b16 %v1694, %v1693
    %v1787 = vpack.c.b16 %v1696, %v1695
    %v1788 = vpack.c.b16 %v1698, %v1697
    %v1789 = vpack.c.b16 %v1700, %v1699
    %v1790 = vpack.c.b16 %v1702, %v1701
    %v1791 = vpack.c.b16 %v1704, %v1703
    %v1792 = vpack.c.b16 %v1706, %v1705
    %v1793 = vpack.c.b16 %v1708, %v1707
    %v1794 = vpack.c.b16 %v1710, %v1709
    %v1795 = vpack.c.b16 %v1712, %v1711
    %v1796 = vpack.c.b16 %v1714, %v1713
    %v1797 = vpack.c.b16 %v1716, %v1715
    %v1798 = vpack.c.b16 %v1718, %v1717
    %v1799 = vpack.c.b16 %v1720, %v1719
    %v1800 = vpack.c.b16 %v1722, %v1721
    %v1801 = vpack.c.b16 %v1724, %v1723
    %v1802 = vpack.c.b16 %v1726, %v1725
    %v1803 = vpack.c.b16 %v1728, %v1727
    %v1804 = vpack.c.b16 %v1730, %v1729
    %v1805 = vpack.c.b16 %v1732, %v1731
    %v1806 = vpack.c.b16 %v1734, %v1733
    %1879 = vmatprep.subr.bf16.mxu0 0
    %1880 = vmatpush1.bf16.msra.mxu0 %v1735
    %1881 = vmatprep.subr.bf16.mxu0 0
    %1882 = vmatpush1.bf16.msra.mxu0 %v1736
    %1883 = vmatprep.subr.bf16.mxu0 0
    %1884 = vmatpush1.bf16.msra.mxu0 %v1737
    %1885 = vmatprep.subr.bf16.mxu0 0
    %1886 = vmatpush1.bf16.msra.mxu0 %v1738
    %1887 = vmatprep.subr.bf16.mxu0 0
    %1888 = vmatpush1.bf16.msra.mxu0 %v1739
    %1889 = vmatprep.subr.bf16.mxu0 0
    %1890 = vmatpush1.bf16.msra.mxu0 %v1740
    %1891 = vmatprep.subr.bf16.mxu0 0
    %1892 = vmatpush1.bf16.msra.mxu0 %v1741
    %1893 = vmatprep.subr.bf16.mxu0 0
    %1894 = vmatpush1.bf16.msra.mxu0 %v1742
    %1895 = vmatprep.subr.bf16.mxu0 0
    %1896 = vmatpush1.bf16.msra.mxu0 %v1743
    %1897 = vmatprep.subr.bf16.mxu0 0
    %1898 = vmatpush1.bf16.msra.mxu0 %v1744
    %1899 = vmatprep.subr.bf16.mxu0 0
    %1900 = vmatpush1.bf16.msra.mxu0 %v1745
    %1901 = vmatprep.subr.bf16.mxu0 0
    %1902 = vmatpush1.bf16.msra.mxu0 %v1746
    %1903 = vmatprep.subr.bf16.mxu0 0
    %1904 = vmatpush1.bf16.msra.mxu0 %v1747
    %1905 = vmatprep.subr.bf16.mxu0 0
    %1906 = vmatpush1.bf16.msra.mxu0 %v1748
    %1907 = vmatprep.subr.bf16.mxu0 0
    %1908 = vmatpush1.bf16.msra.mxu0 %v1749
    %1909 = vmatprep.subr.bf16.mxu0 0
    %1910 = vmatpush1.bf16.msra.mxu0 %v1750
    %1911 = vmatprep.mubr.bf16.mxu0 %v1288
    %1912 = vmatmul.mubr.bf16.gmra.mrb[0].mxu0 %v1287
    %v1913 = vpop.f32.mrb[0].mxu0
    %v1914 = vadd.f32 %v1445, %v1913
    %v1915 = vpop.f32.mrb[0].mxu0
    %v1916 = vpop.f32.mrb[0].mxu0
    %v1917 = vpop.f32.mrb[0].mxu0
    %1918 = vdwg.mxu0
    %1919 = vmatprep.subr.bf16.mxu0 0
    %1920 = vmatpush1.bf16.msra.mxu0 %v1751
    %1921 = vmatprep.subr.bf16.mxu0 0
    %1922 = vmatpush1.bf16.msra.mxu0 %v1752
    %1923 = vmatprep.subr.bf16.mxu0 0
    %1924 = vmatpush1.bf16.msra.mxu0 %v1753
    %1925 = vmatprep.subr.bf16.mxu0 0
    %1926 = vmatpush1.bf16.msra.mxu0 %v1754
    %1927 = vmatprep.subr.bf16.mxu0 0
    %1928 = vmatpush1.bf16.msra.mxu0 %v1755
    %1929 = vmatprep.subr.bf16.mxu0 0
    %1930 = vmatpush1.bf16.msra.mxu0 %v1756
    %1931 = vmatprep.subr.bf16.mxu0 0
    %1932 = vmatpush1.bf16.msra.mxu0 %v1757
    %1933 = vmatprep.subr.bf16.mxu0 0
    %1934 = vmatpush1.bf16.msra.mxu0 %v1758
    %1935 = vmatprep.subr.bf16.mxu0 0
    %1936 = vmatpush1.bf16.msra.mxu0 %v1759
    %1937 = vmatprep.subr.bf16.mxu0 0
    %1938 = vmatpush1.bf16.msra.mxu0 %v1760
    %1939 = vmatprep.subr.bf16.mxu0 0
    %1940 = vmatpush1.bf16.msra.mxu0 %v1761
    %1941 = vmatprep.subr.bf16.mxu0 0
    %1942 = vmatpush1.bf16.msra.mxu0 %v1762
    %1943 = vmatprep.subr.bf16.mxu0 0
    %1944 = vmatpush1.bf16.msra.mxu0 %v1763
    %1945 = vmatprep.subr.bf16.mxu0 0
    %1946 = vmatpush1.bf16.msra.mxu0 %v1764
    %1947 = vmatprep.subr.bf16.mxu0 0
    %1948 = vmatpush1.bf16.msra.mxu0 %v1765
    %1949 = vmatprep.subr.bf16.mxu0 0
    %1950 = vmatpush1.bf16.msra.mxu0 %v1766
    %1951 = vmatprep.mubr.bf16.mxu0 %v1290
    %1952 = vmatmul.mubr.bf16.gmra.mrb[0].mxu0 %v1289
    %v1953 = vpop.f32.mrb[0].mxu0
    %v1954 = vadd.f32 %v1914, %v1953
    %v1955 = vpop.f32.mrb[0].mxu0
    %v1956 = vpop.f32.mrb[0].mxu0
    %v1957 = vpop.f32.mrb[0].mxu0
    %1958 = vdwg.mxu0
    %1959 = vmatprep.subr.bf16.mxu0 0
    %1960 = vmatpush1.bf16.msra.mxu0 %v1767
    %1961 = vmatprep.subr.bf16.mxu0 0
    %1962 = vmatpush1.bf16.msra.mxu0 %v1768
    %1963 = vmatprep.subr.bf16.mxu0 0
    %1964 = vmatpush1.bf16.msra.mxu0 %v1769
    %1965 = vmatprep.subr.bf16.mxu0 0
    %1966 = vmatpush1.bf16.msra.mxu0 %v1770
    %1967 = vmatprep.subr.bf16.mxu0 0
    %1968 = vmatpush1.bf16.msra.mxu0 %v1771
    %1969 = vmatprep.subr.bf16.mxu0 0
    %1970 = vmatpush1.bf16.msra.mxu0 %v1772
    %1971 = vmatprep.subr.bf16.mxu0 0
    %1972 = vmatpush1.bf16.msra.mxu0 %v1773
    %1973 = vmatprep.subr.bf16.mxu0 0
    %1974 = vmatpush1.bf16.msra.mxu0 %v1774
    %1975 = vmatprep.subr.bf16.mxu0 0
    %1976 = vmatpush1.bf16.msra.mxu0 %v1775
    %1977 = vmatprep.subr.bf16.mxu0 0
    %1978 = vmatpush1.bf16.msra.mxu0 %v1776
    %1979 = vmatprep.subr.bf16.mxu0 0
    %1980 = vmatpush1.bf16.msra.mxu0 %v1777
    %1981 = vmatprep.subr.bf16.mxu0 0
    %1982 = vmatpush1.bf16.msra.mxu0 %v1778
    %1983 = vmatprep.subr.bf16.mxu0 0
    %1984 = vmatpush1.bf16.msra.mxu0 %v1779
    %1985 = vmatprep.subr.bf16.mxu0 0
    %1986 = vmatpush1.bf16.msra.mxu0 %v1780
    %1987 = vmatprep.subr.bf16.mxu0 0
    %1988 = vmatpush1.bf16.msra.mxu0 %v1781
    %1989 = vmatprep.subr.bf16.mxu0 0
    %1990 = vmatpush1.bf16.msra.mxu0 %v1782
    %1991 = vmatprep.mubr.bf16.mxu0 %v1292
    %1992 = vmatmul.mubr.bf16.gmra.mrb[0].mxu0 %v1291
    %v1993 = vpop.f32.mrb[0].mxu0
    %v1994 = vadd.f32 %v1954, %v1993
    %v1995 = vpop.f32.mrb[0].mxu0
    %v1996 = vpop.f32.mrb[0].mxu0
    %v1997 = vpop.f32.mrb[0].mxu0
    %1998 = vdwg.mxu0
    %1999 = vmatprep.subr.bf16.mxu0 0
    %2000 = vmatpush1.bf16.msra.mxu0 %v1783
    %2001 = vmatprep.subr.bf16.mxu0 0
    %2002 = vmatpush1.bf16.msra.mxu0 %v1784
    %2003 = vmatprep.subr.bf16.mxu0 0
    %2004 = vmatpush1.bf16.msra.mxu0 %v1785
    %2005 = vmatprep.subr.bf16.mxu0 0
    %2006 = vmatpush1.bf16.msra.mxu0 %v1786
    %2007 = vmatprep.subr.bf16.mxu0 0
    %2008 = vmatpush1.bf16.msra.mxu0 %v1787
    %2009 = vmatprep.subr.bf16.mxu0 0
    %2010 = vmatpush1.bf16.msra.mxu0 %v1788
    %2011 = vmatprep.subr.bf16.mxu0 0
    %2012 = vmatpush1.bf16.msra.mxu0 %v1789
    %2013 = vmatprep.subr.bf16.mxu0 0
    %2014 = vmatpush1.bf16.msra.mxu0 %v1790
    %2015 = vmatprep.subr.bf16.mxu0 0
    %2016 = vmatpush1.bf16.msra.mxu0 %v1791
    %2017 = vmatprep.subr.bf16.mxu0 0
    %2018 = vmatpush1.bf16.msra.mxu0 %v1792
    %2019 = vmatprep.subr.bf16.mxu0 0
    %2020 = vmatpush1.bf16.msra.mxu0 %v1793
    %2021 = vmatprep.subr.bf16.mxu0 0
    %2022 = vmatpush1.bf16.msra.mxu0 %v1794
    %2023 = vmatprep.subr.bf16.mxu0 0
    %2024 = vmatpush1.bf16.msra.mxu0 %v1795
    %2025 = vmatprep.subr.bf16.mxu0 0
    %2026 = vmatpush1.bf16.msra.mxu0 %v1796
    %2027 = vmatprep.subr.bf16.mxu0 0
    %2028 = vmatpush1.bf16.msra.mxu0 %v1797
    %2029 = vmatprep.subr.bf16.mxu0 0
    %2030 = vmatpush1.bf16.msra.mxu0 %v1798
    %2031 = vmatprep.mubr.bf16.mxu0 %v1294
    %2032 = vmatmul.mubr.bf16.gmra.mrb[0].mxu0 %v1293
    %v2033 = vpop.f32.mrb[0].mxu0
    %v2034 = vadd.f32 %v1994, %v2033
    %v2035 = vpop.f32.mrb[0].mxu0
    %v2036 = vpop.f32.mrb[0].mxu0
    %v2037 = vpop.f32.mrb[0].mxu0
    %2038 = vdwg.mxu0
    %2039 = vmatprep.subr.bf16.mxu0 0
    %2040 = vmatpush1.bf16.msra.mxu0 %v1799
    %2041 = vmatprep.subr.bf16.mxu0 0
    %2042 = vmatpush1.bf16.msra.mxu0 %v1800
    %2043 = vmatprep.subr.bf16.mxu0 0
    %2044 = vmatpush1.bf16.msra.mxu0 %v1801
    %2045 = vmatprep.subr.bf16.mxu0 0
    %2046 = vmatpush1.bf16.msra.mxu0 %v1802
    %2047 = vmatprep.subr.bf16.mxu0 0
    %2048 = vmatpush1.bf16.msra.mxu0 %v1803
    %2049 = vmatprep.subr.bf16.mxu0 0
    %2050 = vmatpush1.bf16.msra.mxu0 %v1804
    %2051 = vmatprep.subr.bf16.mxu0 0
    %2052 = vmatpush1.bf16.msra.mxu0 %v1805
    %2053 = vmatprep.subr.bf16.mxu0 0
    %2054 = vmatpush1.bf16.msra.mxu0 %v1806
    %2055 = vmatprep.subr.bf16.mxu0 0
    %2056 = vmatpush1.bf16.msra.mxu0 0
    %2057 = vmatprep.subr.bf16.mxu0 0
    %2058 = vmatpush1.bf16.msra.mxu0 0
    %2059 = vmatprep.subr.bf16.mxu0 0
    %2060 = vmatpush1.bf16.msra.mxu0 0
    %2061 = vmatprep.subr.bf16.mxu0 0
    %2062 = vmatpush1.bf16.msra.mxu0 0
    %2063 = vmatprep.subr.bf16.mxu0 0
    %2064 = vmatpush1.bf16.msra.mxu0 0
    %2065 = vmatprep.subr.bf16.mxu0 0
    %2066 = vmatpush1.bf16.msra.mxu0 0
    %2067 = vmatprep.subr.bf16.mxu0 0
    %2068 = vmatpush1.bf16.msra.mxu0 0
    %2069 = vmatprep.subr.bf16.mxu0 0
    %2070 = vmatpush1.bf16.msra.mxu0 0
    %2071 = vmatprep.mubr.bf16.mxu0 0
    %2072 = vmatmul.mubr.bf16.gmra.mrb[0].mxu0 %v1295
    %v2073 = vpop.f32.mrb[0].mxu0
    %v2074 = vadd.f32 %v2034, %v2073
    %v2075 = vpop.f32.mrb[0].mxu0
    %v2076 = vpop.f32.mrb[0].mxu0
    %v2077 = vpop.f32.mrb[0].mxu0
    %2078 = vdwg.mxu0
    %v2079 = vmul.f32 %v2074, 0.5
    %v2080 = vmul.f32 %v2074, 0.70710677
    %v2081 = vand.u32 2147483647, %v2080
    %v2082 = vmul.f32 %v2081, 0.3275911
    %v2083 = vadd.f32 %v2082, 1.0
    %v2084 = vrcp.pop %v2083
    %v2085 = vmul.f32 %v2084, 1.0614054
    %v2086 = vadd.f32 %v2085, -1.4531521
    %v2087 = vmul.f32 %v2084, %v2086
    %v2088 = vadd.f32 %v2087, 1.4214138
    %v2089 = vmul.f32 %v2084, %v2088
    %v2090 = vadd.f32 %v2089, -0.28449672
    %v2091 = vmul.f32 %v2084, %v2090
    %v2092 = vadd.f32 %v2091, 0.2548296
    %v2093 = vmul.f32 %v2084, %v2092
    %v2094 = vsub.f32 0.0, %v2081
    %v2095 = vmul.f32 %v2094, %v2081
    %v2096 = vmul.f32 %v2095, 1.442695
    %v2097 = vpow.pop %v2096
    %v2098 = vmul.f32 %v2093, %v2097
    %v2099 = vsub.f32 1.0, %v2098
    %vm2100 = vcmp.ge.f32.partialorder %v2080, 0.0
    %v2101 = vsub.f32 0.0, %v2099
    %v2102 = vsel %vm2100, %v2099, %v2101
    %v2103 = vadd.f32 %v2102, 1.0
    %v2104 = vmul.f32 %v2079, %v2103
    %v2105 = vadd.f32 %v2104, 1.0
    %v2107 = vrot.slane %v2105, 7
    %vm2109 = vcmask 1040384
    %v2110 = vsel %vm2109, 0.0, %v2107
    %v2111 = vrot.slane %v2105, 1
    %v2113 = vsel %vm67, %v2111, 0.0
    %v2114 = vpack.c.bf16 %v2110, %v2110
    %v2115 = vpack.c.bf16 %v2105, %v2105
    %v2116 = vpack.c.bf16 %v2113, %v2113
    %v2117 = vld [vmem:[#allocation4] sm:$0xf]
    %v2118 = vld [vmem:[#allocation4 + $0x4] sm:$0xf]
    %v2119 = vld [vmem:[#allocation4 + $0x8] sm:$0xf]
    %v2120 = vld [vmem:[#allocation4 + $0xc] sm:$0xf]
    %v2121 = vld [vmem:[#allocation4 + $0x10] sm:$0xf]
    %v2122 = vld [vmem:[#allocation4 + $0x14] sm:$0xf]
    %v2123 = vld [vmem:[#allocation4 + $0x18] sm:$0xf]
    %v2124 = vld [vmem:[#allocation4 + $0x1c] sm:$0xf]
    %v2125 = vld [vmem:[#allocation4 + $0x20] sm:$0xf]
    %v2126 = vld [vmem:[#allocation4 + $0x24] sm:$0xf]
    %v2127 = vld [vmem:[#allocation4 + $0x28] sm:$0xf]
    %v2128 = vld [vmem:[#allocation4 + $0x2c] sm:$0xf]
    %v2129 = vld [vmem:[#allocation4 + $0x30] sm:$0xf]
    %v2130 = vld [vmem:[#allocation4 + $0x34] sm:$0xf]
    %v2131 = vld [vmem:[#allocation4 + $0x38] sm:$0xf]
    %v2132 = vld [vmem:[#allocation4 + $0x3c] sm:$0xf]
    %v2133 = vld [vmem:[#allocation4 + $0x40] sm:$0xf]
    %v2134 = vld [vmem:[#allocation4 + $0x44] sm:$0xf]
    %v2135 = vld [vmem:[#allocation4 + $0x48] sm:$0xf]
    %v2136 = vld [vmem:[#allocation4 + $0x4c] sm:$0xf]
    %v2137 = vld [vmem:[#allocation4 + $0x50] sm:$0xf]
    %v2138 = vld [vmem:[#allocation4 + $0x54] sm:$0xf]
    %v2139 = vld [vmem:[#allocation4 + $0x58] sm:$0xf]
    %v2140 = vld [vmem:[#allocation4 + $0x5c] sm:$0xf]
    %v2141 = vld [vmem:[#allocation4 + $0x60] sm:$0xf]
    %v2142 = vld [vmem:[#allocation4 + $0x64] sm:$0xf]
    %v2143 = vld [vmem:[#allocation4 + $0x68] sm:$0xf]
    %v2144 = vld [vmem:[#allocation4 + $0x6c] sm:$0xf]
    %v2145 = vld [vmem:[#allocation4 + $0x70] sm:$0xf]
    %v2146 = vld [vmem:[#allocation4 + $0x74] sm:$0xf]
    %v2147 = vld [vmem:[#allocation4 + $0x78] sm:$0xf]
    %v2148 = vld [vmem:[#allocation4 + $0x7c] sm:$0xf]
    %v2149 = vld [vmem:[#allocation4 + $0x80] sm:$0xf]
    %v2150 = vld [vmem:[#allocation4 + $0x84] sm:$0xf]
    %v2151 = vld [vmem:[#allocation4 + $0x88] sm:$0xf]
    %v2152 = vld [vmem:[#allocation4 + $0x8c] sm:$0xf]
    %v2153 = vld [vmem:[#allocation4 + $0x90] sm:$0xf]
    %v2154 = vld [vmem:[#allocation4 + $0x94] sm:$0xf]
    %v2155 = vld [vmem:[#allocation4 + $0x98] sm:$0xf]
    %v2156 = vld [vmem:[#allocation4 + $0x9c] sm:$0xf]
    %v2157 = vld [vmem:[#allocation4 + $0xa0] sm:$0xf]
    %v2158 = vld [vmem:[#allocation4 + $0xa4] sm:$0xf]
    %v2159 = vld [vmem:[#allocation4 + $0xa8] sm:$0xf]
    %v2160 = vld [vmem:[#allocation4 + $0xac] sm:$0xf]
    %v2161 = vld [vmem:[#allocation4 + $0xb0] sm:$0xf]
    %v2162 = vld [vmem:[#allocation4 + $0xb4] sm:$0xf]
    %v2163 = vld [vmem:[#allocation4 + $0xb8] sm:$0xf]
    %v2164 = vld [vmem:[#allocation4 + $0xbc] sm:$0xf]
    %v2165 = vld [vmem:[%s6] sm:$0x1]
    %v2167 = vlaneseq
    %v2168 = vshrl.u32 %v2167, 7
    %v2169 = vsub.s32 0, %v2168
    %v2170 = vrot.slane %v2165, %v2169
    %v2220 = vunpack.c.l.b16 %v2117
    %v2221 = vunpack.c.l.b16 %v2118
    %v2222 = vunpack.c.l.b16 %v2119
    %v2223 = vunpack.c.l.b16 %v2120
    %v2224 = vunpack.c.l.b16 %v2121
    %v2225 = vunpack.c.l.b16 %v2122
    %v2226 = vunpack.c.l.b16 %v2123
    %v2227 = vunpack.c.l.b16 %v2124
    %v2228 = vunpack.c.l.b16 %v2125
    %v2229 = vunpack.c.l.b16 %v2126
    %v2230 = vunpack.c.l.b16 %v2127
    %v2231 = vunpack.c.l.b16 %v2128
    %v2232 = vunpack.c.l.b16 %v2129
    %v2233 = vunpack.c.l.b16 %v2130
    %v2234 = vunpack.c.l.b16 %v2131
    %v2235 = vunpack.c.l.b16 %v2132
    %v2236 = vunpack.c.l.b16 %v2133
    %v2237 = vunpack.c.l.b16 %v2134
    %v2238 = vunpack.c.l.b16 %v2135
    %v2239 = vunpack.c.l.b16 %v2136
    %v2240 = vunpack.c.l.b16 %v2137
    %v2241 = vunpack.c.l.b16 %v2138
    %v2242 = vunpack.c.l.b16 %v2139
    %v2243 = vunpack.c.l.b16 %v2140
    %v2244 = vunpack.c.l.b16 %v2141
    %v2245 = vunpack.c.l.b16 %v2142
    %v2246 = vunpack.c.l.b16 %v2143
    %v2247 = vunpack.c.l.b16 %v2144
    %v2248 = vunpack.c.l.b16 %v2145
    %v2249 = vunpack.c.l.b16 %v2146
    %v2250 = vunpack.c.l.b16 %v2147
    %v2251 = vunpack.c.l.b16 %v2148
    %v2252 = vunpack.c.l.b16 %v2149
    %v2253 = vunpack.c.l.b16 %v2150
    %v2254 = vunpack.c.l.b16 %v2151
    %v2255 = vunpack.c.l.b16 %v2152
    %v2256 = vunpack.c.l.b16 %v2153
    %v2257 = vunpack.c.l.b16 %v2154
    %v2258 = vunpack.c.l.b16 %v2155
    %v2259 = vunpack.c.l.b16 %v2156
    %v2260 = vunpack.c.l.b16 %v2157
    %v2261 = vunpack.c.l.b16 %v2158
    %v2262 = vunpack.c.l.b16 %v2159
    %v2263 = vunpack.c.l.b16 %v2160
    %v2264 = vunpack.c.l.b16 %v2161
    %v2265 = vunpack.c.l.b16 %v2162
    %v2266 = vunpack.c.l.b16 %v2163
    %v2267 = vunpack.c.l.b16 %v2164
    %v2268 = vpack.c.b16 %v2221, %v2220
    %v2269 = vpack.c.b16 %v2223, %v2222
    %v2270 = vpack.c.b16 %v2225, %v2224
    %v2271 = vpack.c.b16 %v2227, %v2226
    %v2272 = vpack.c.b16 %v2229, %v2228
    %v2273 = vpack.c.b16 %v2231, %v2230
    %v2274 = vpack.c.b16 %v2233, %v2232
    %v2275 = vpack.c.b16 %v2235, %v2234
    %v2276 = vpack.c.b16 %v2237, %v2236
    %v2277 = vpack.c.b16 %v2239, %v2238
    %v2278 = vpack.c.b16 %v2241, %v2240
    %v2279 = vpack.c.b16 %v2243, %v2242
    %v2280 = vpack.c.b16 %v2245, %v2244
    %v2281 = vpack.c.b16 %v2247, %v2246
    %v2282 = vpack.c.b16 %v2249, %v2248
    %v2283 = vpack.c.b16 %v2251, %v2250
    %v2284 = vpack.c.b16 %v2253, %v2252
    %v2285 = vpack.c.b16 %v2255, %v2254
    %v2286 = vpack.c.b16 %v2257, %v2256
    %v2287 = vpack.c.b16 %v2259, %v2258
    %v2288 = vpack.c.b16 %v2261, %v2260
    %v2289 = vpack.c.b16 %v2263, %v2262
    %v2290 = vpack.c.b16 %v2265, %v2264
    %v2291 = vpack.c.b16 %v2267, %v2266
    %2316 = vmatprep.subr.bf16.mxu0 0
    %2317 = vmatpush1.bf16.msra.mxu0 %v2268
    %2318 = vmatprep.subr.bf16.mxu0 0
    %2319 = vmatpush1.bf16.msra.mxu0 %v2269
    %2320 = vmatprep.subr.bf16.mxu0 0
    %2321 = vmatpush1.bf16.msra.mxu0 %v2270
    %2322 = vmatprep.subr.bf16.mxu0 0
    %2323 = vmatpush1.bf16.msra.mxu0 %v2271
    %2324 = vmatprep.subr.bf16.mxu0 0
    %2325 = vmatpush1.bf16.msra.mxu0 %v2272
    %2326 = vmatprep.subr.bf16.mxu0 0
    %2327 = vmatpush1.bf16.msra.mxu0 %v2273
    %2328 = vmatprep.subr.bf16.mxu0 0
    %2329 = vmatpush1.bf16.msra.mxu0 %v2274
    %2330 = vmatprep.subr.bf16.mxu0 0
    %2331 = vmatpush1.bf16.msra.mxu0 %v2275
    %2332 = vmatprep.subr.bf16.mxu0 0
    %2333 = vmatpush1.bf16.msra.mxu0 %v2276
    %2334 = vmatprep.subr.bf16.mxu0 0
    %2335 = vmatpush1.bf16.msra.mxu0 %v2277
    %2336 = vmatprep.subr.bf16.mxu0 0
    %2337 = vmatpush1.bf16.msra.mxu0 %v2278
    %2338 = vmatprep.subr.bf16.mxu0 0
    %2339 = vmatpush1.bf16.msra.mxu0 %v2279
    %2340 = vmatprep.subr.bf16.mxu0 0
    %2341 = vmatpush1.bf16.msra.mxu0 %v2280
    %2342 = vmatprep.subr.bf16.mxu0 0
    %2343 = vmatpush1.bf16.msra.mxu0 %v2281
    %2344 = vmatprep.subr.bf16.mxu0 0
    %2345 = vmatpush1.bf16.msra.mxu0 %v2282
    %2346 = vmatprep.subr.bf16.mxu0 0
    %2347 = vmatpush1.bf16.msra.mxu0 %v2283
    %2348 = vmatprep.mubr.bf16.mxu0 %v2115
    %2349 = vmatmul.mubr.bf16.gmra.mrb[0].mxu0 %v2114
    %v2350 = vpop.f32.mrb[0].mxu0
    %v2351 = vadd.f32 %v2170, %v2350
    %v2352 = vpop.f32.mrb[0].mxu0
    %v2353 = vpop.f32.mrb[0].mxu0
    %v2354 = vpop.f32.mrb[0].mxu0
    %2355 = vdwg.mxu0
    %2356 = vmatprep.subr.bf16.mxu0 0
    %2357 = vmatpush1.bf16.msra.mxu0 %v2284
    %2358 = vmatprep.subr.bf16.mxu0 0
    %2359 = vmatpush1.bf16.msra.mxu0 %v2285
    %2360 = vmatprep.subr.bf16.mxu0 0
    %2361 = vmatpush1.bf16.msra.mxu0 %v2286
    %2362 = vmatprep.subr.bf16.mxu0 0
    %2363 = vmatpush1.bf16.msra.mxu0 %v2287
    %2364 = vmatprep.subr.bf16.mxu0 0
    %2365 = vmatpush1.bf16.msra.mxu0 %v2288
    %2366 = vmatprep.subr.bf16.mxu0 0
    %2367 = vmatpush1.bf16.msra.mxu0 %v2289
    %2368 = vmatprep.subr.bf16.mxu0 0
    %2369 = vmatpush1.bf16.msra.mxu0 %v2290
    %2370 = vmatprep.subr.bf16.mxu0 0
    %2371 = vmatpush1.bf16.msra.mxu0 %v2291
    %2372 = vmatprep.subr.bf16.mxu0 0
    %2373 = vmatpush1.bf16.msra.mxu0 0
    %2374 = vmatprep.subr.bf16.mxu0 0
    %2375 = vmatpush1.bf16.msra.mxu0 0
    %2376 = vmatprep.subr.bf16.mxu0 0
    %2377 = vmatpush1.bf16.msra.mxu0 0
    %2378 = vmatprep.subr.bf16.mxu0 0
    %2379 = vmatpush1.bf16.msra.mxu0 0
    %2380 = vmatprep.subr.bf16.mxu0 0
    %2381 = vmatpush1.bf16.msra.mxu0 0
    %2382 = vmatprep.subr.bf16.mxu0 0
    %2383 = vmatpush1.bf16.msra.mxu0 0
    %2384 = vmatprep.subr.bf16.mxu0 0
    %2385 = vmatpush1.bf16.msra.mxu0 0
    %2386 = vmatprep.subr.bf16.mxu0 0
    %2387 = vmatpush1.bf16.msra.mxu0 0
    %2388 = vmatprep.mubr.bf16.mxu0 0
    %2389 = vmatmul.mubr.bf16.gmra.mrb[0].mxu0 %v2116
    %v2390 = vpop.f32.mrb[0].mxu0
    %v2391 = vadd.f32 %v2351, %v2390
    %v2392 = vpop.f32.mrb[0].mxu0
    %v2393 = vpop.f32.mrb[0].mxu0
    %v2394 = vpop.f32.mrb[0].mxu0
    %2395 = vdwg.mxu0
    %2396 = vst [vmem:[%s7] sm:$0xff] %v2391
    // Predicated region
    $region38: #{model_forward.1} parent=1 // pred_check
      _
    $region39: #{model_forward.1} parent=1 // pred_check_branch
      %2398 = sbr.rel (0) target = $region41
    $region40: #{model_forward.1} parent=1 // pred_region
      _
    $region41: #{model_forward.1} parent=1 // pred_fallthru
      _
    // Predicated region
    $region42: #{model_forward.1} parent=1 // pred_check
      _
    $region43: #{model_forward.1} parent=1 // pred_check_branch
      %2400 = sbr.rel (0) target = $region45
    $region44: #{model_forward.1} parent=1 // pred_region
      _
    $region45: #{model_forward.1} parent=1 // pred_fallthru
      _
    %2401 = vsyncpa [#allocation3], 1
    %2402 = vsyncpa [#allocation5], 1

</llo_original>
